<compile_context>
chip_gen: v7x
topology: tpu7x:2x2x1
jax: 0.10.0
libtpu: 0.0.40
codegen_flags: <defaults>
</compile_context>

<pallas_src>
import jax
import jax.numpy as jnp
from jax.experimental import pallas as pl
from jax.experimental.pallas import tpu as pltpu


def obs_encoder_kernel(x_ref, w1_ref, b1_ref, w2_ref, b2_ref, o_ref):
    # Cast x to bf16 in-kernel (saves a wrapper-side HBM cast pass).
    x = x_ref[...].astype(jnp.bfloat16)
    # fc1: bf16 MXU matmul, f32 accumulate; bias + ReLU epilogue in f32 (VPU).
    h = jnp.dot(x, w1_ref[...], preferred_element_type=jnp.float32)
    h = jnp.maximum(h + b1_ref[...], 0.0)
    # fc2: recast hidden to bf16 for the MXU, accumulate in f32.
    out = jnp.dot(h.astype(jnp.bfloat16), w2_ref[...],
                  preferred_element_type=jnp.float32)
    out = jnp.maximum(out + b2_ref[...], 0.0)
    o_ref[...] = out.astype(o_ref.dtype)


def _cdiv(a, b):
    return -(-a // b)


def _round_up(a, m):
    return _cdiv(a, m) * m


def _hw_caps():
    """(physical VMEM bytes, has-two-TensorCores) with conservative fallbacks."""
    vmem_cap = 128 << 20  # v5e / v6e
    try:
        vmem_cap = int(pltpu.get_tpu_info().vmem_capacity_bytes)
    except Exception:
        pass
    # v7x: 64 MiB VMEM per TC, 2 TCs per chip.
    two_cores = vmem_cap <= (64 << 20)
    try:
        if "v7" in jax.devices()[0].device_kind.lower():
            two_cores = True
    except Exception:
        pass
    return vmem_cap, two_cores


def _choose_tile_b(B, per_row_bytes, budget_bytes, two_cores, max_tile=8192):
    """Batch tile: multiple of 128, under the VMEM tile budget. On single-TC
    chips keep the largest tile that fits (the grid is a serial loop, smaller
    tiles only add per-step overhead). On 2-TC chips force >= 2 steps and an
    even step count so both cores get work."""
    cap = max(128, (budget_bytes // max(per_row_bytes, 1)) // 128 * 128)
    tile = min(cap, max_tile, _round_up(B, 128))
    if two_cores and B > 128:
        tile = min(tile, _round_up(_cdiv(B, 2), 128))   # at least 2 steps
        n = _cdiv(B, tile)
        if n > 1 and n % 2:                             # rebalance to even count
            tile = max(128, _round_up(_cdiv(B, n + 1), 128))
    return tile


def prepare_obs_encoder_params(w1, b1, w2, b2):
    """One-time cast of parameters to kernel dtypes (do this at init time, not
    per call): bf16 weights for the MXU, (1, dim) f32 bias rows for the VPU."""
    return (w1.astype(jnp.bfloat16),
            jnp.asarray(b1, jnp.float32).reshape(1, -1),
            w2.astype(jnp.bfloat16),
            jnp.asarray(b2, jnp.float32).reshape(1, -1))


def obs_encoder(x, w1, b1, w2, b2, *, tile_b=None, out_dtype=None):
    """x: (B, in_dim); w1: (in_dim, h_dim); b1: (1, h_dim) or (h_dim,);
    w2: (h_dim, o_dim); b2: (1, o_dim) or (o_dim,)  -> (B, o_dim)."""
    B, in_dim = x.shape
    h_dim = w1.shape[1]
    o_dim = w2.shape[1]
    out_dtype = x.dtype if out_dtype is None else jnp.dtype(out_dtype)
    out_bytes = jnp.dtype(out_dtype).itemsize
    x_bytes = jnp.dtype(x.dtype).itemsize

    # Defensive one-time casts (no-ops if prepare_obs_encoder_params was used).
    if w1.dtype != jnp.bfloat16:
        w1 = w1.astype(jnp.bfloat16)
    if w2.dtype != jnp.bfloat16:
        w2 = w2.astype(jnp.bfloat16)
    if b1.ndim == 1:
        b1 = b1.reshape(1, -1)
    if b2.ndim == 1:
        b2 = b2.reshape(1, -1)
    if b1.dtype != jnp.float32:
        b1 = b1.astype(jnp.float32)
    if b2.dtype != jnp.float32:
        b2 = b2.astype(jnp.float32)

    vmem_cap, two_cores = _hw_caps()

    # Resident parameter footprint (count 2x in case weights end up
    # double-buffered on the fallback path).
    weights_bytes = (in_dim * h_dim + h_dim * o_dim) * 2 + (h_dim + o_dim) * 4

    # Per-row VMEM working set for a batch tile:
    #   x tile (native dtype, double-buffered) + its bf16 copy,
    #   f32 hidden + bf16 recast, f32 pre-cast output,
    #   output tile (double-buffered).
    per_row = (2 * in_dim * x_bytes
               + in_dim * 2
               + h_dim * (4 + 2)
               + o_dim * 4
               + 2 * o_dim * out_bytes)

    if tile_b is None:
        budget = max(4 << 20, int(0.35 * vmem_cap) - 2 * weights_bytes)
        tile_b = _choose_tile_b(B, per_row, budget, two_cores)

    n_steps = _cdiv(B, tile_b)  # ragged last block is masked by Pallas

    # Explicit VMEM limit, never above 0.75x physical VMEM (v7x has 64 MiB).
    per_step_bytes = per_row * tile_b
    vmem_limit = int(1.5 * (2 * weights_bytes + per_step_bytes)) + (2 << 20)
    vmem_limit = min(max(vmem_limit, 16 << 20), int(0.75 * vmem_cap))

    cost = pl.CostEstimate(
        flops=2 * B * (in_dim * h_dim + h_dim * o_dim),
        transcendentals=0,
        bytes_accessed=(B * in_dim * x_bytes           # x, native dtype
                        + in_dim * h_dim * 2           # W1 (bf16)
                        + h_dim * o_dim * 2            # W2 (bf16)
                        + (h_dim + o_dim) * 4          # biases (f32)
                        + B * o_dim * out_bytes),      # output
    )

    def _build(weight_pipeline_mode):
        wkw = ({} if weight_pipeline_mode is None
               else {"pipeline_mode": weight_pipeline_mode})
        return pl.pallas_call(
            obs_encoder_kernel,
            out_shape=jax.ShapeDtypeStruct((B, o_dim), out_dtype),
            grid_spec=pltpu.PrefetchScalarGridSpec(
                num_scalar_prefetch=0,
                grid=(n_steps,),
                in_specs=[
                    pl.BlockSpec((tile_b, in_dim), lambda i: (i, 0)),        # x
                    pl.BlockSpec((in_dim, h_dim), lambda i: (0, 0), **wkw),  # W1
                    pl.BlockSpec((1, h_dim), lambda i: (0, 0), **wkw),       # b1
                    pl.BlockSpec((h_dim, o_dim), lambda i: (0, 0), **wkw),   # W2
                    pl.BlockSpec((1, o_dim), lambda i: (0, 0), **wkw),       # b2
                ],
                out_specs=pl.BlockSpec((tile_b, o_dim), lambda i: (i, 0)),
            ),
            compiler_params=pltpu.CompilerParams(
                dimension_semantics=("parallel",),
                vmem_limit_bytes=vmem_limit,
            ),
            cost_estimate=cost,
        )

    try:
        # Resident (constant-index) params only need one buffer.
        return _build(pl.Buffered(buffer_count=1))(x, w1, b1, w2, b2)
    except Exception:
        # Fallback: default (double) buffering if this Pallas build rejects
        # single-buffered pipeline_mode on resident specs.
        return _build(None)(x, w1, b1, w2, b2)


def obs_encoder_ref(x, w1, b1, w2, b2, *, mxu_dtype=jnp.float32):
    """Pure-JAX reference.  mxu_dtype=bfloat16 emulates the kernel's MXU
    input precision (f32 accumulation either way)."""
    xd, w1d, w2d = (a.astype(mxu_dtype) for a in (x, w1, w2))
    h = jnp.maximum(
        jnp.dot(xd, w1d, preferred_element_type=jnp.float32) + b1, 0.0)
    o = jnp.maximum(
        jnp.dot(h.astype(mxu_dtype), w2d, preferred_element_type=jnp.float32)
        + b2, 0.0)
    return o.astype(x.dtype)


if __name__ == "__main__":
    # Shapes consistent with ObsEncoder(in_dim, o_dim=128, h_dim=512).
    # B=256 keeps the demo small while exercising batch tiling.
    B, in_dim, h_dim, o_dim = 256, 32, 512, 128

    key = jax.random.PRNGKey(0)
    kx, k1, kb1, k2, kb2 = jax.random.split(key, 5)

    # Deterministic init (matches PyTorch Linear fan-in uniform scale).
    bound1 = 1.0 / jnp.sqrt(in_dim)
    bound2 = 1.0 / jnp.sqrt(h_dim)
    x = jax.random.normal(kx, (B, in_dim), dtype=jnp.float32)
    w1 = jax.random.uniform(k1, (in_dim, h_dim), jnp.float32, -bound1, bound1)
    b1 = jax.random.uniform(kb1, (1, h_dim), jnp.float32, -bound1, bound1)
    w2 = jax.random.uniform(k2, (h_dim, o_dim), jnp.float32, -bound2, bound2)
    b2 = jax.random.uniform(kb2, (1, o_dim), jnp.float32, -bound2, bound2)

    # One-time parameter cast (bf16 weights, f32 bias rows).
    params = prepare_obs_encoder_params(w1, b1, w2, b2)

    out = obs_encoder(x, *params)
    out = jax.block_until_ready(out)
    assert out.shape == (B, o_dim)
    assert out.dtype == x.dtype

    # Tight check vs a reference that uses the same bf16 MXU inputs.
    ref_bf16 = obs_encoder_ref(x, w1, b1, w2, b2, mxu_dtype=jnp.bfloat16)
    assert jnp.allclose(out, ref_bf16, atol=5e-3, rtol=5e-3)

    # Loose check vs the full-f32 reference (bf16 input quantization error).
    ref_f32 = obs_encoder_ref(x, w1, b1, w2, b2, mxu_dtype=jnp.float32)
    assert jnp.allclose(out, ref_f32, atol=3e-2, rtol=3e-2)

    # Optional narrow-output path (halves output HBM writeback when the
    # consumer accepts bf16); verify against the f32-output kernel result.
    out_bf16 = obs_encoder(x, *params, out_dtype=jnp.bfloat16)
    out_bf16 = jax.block_until_ready(out_bf16)
    assert out_bf16.shape == (B, o_dim) and out_bf16.dtype == jnp.bfloat16
    assert jnp.allclose(out_bf16.astype(jnp.float32), out, atol=3e-2, rtol=3e-2)

    print("KERNEL_OK")
</pallas_src>

<mosaic_0001>
module attributes {stable_mosaic.version = 11 : i64} {
  func.func @obs_encoder_kernel(%arg0: i32, %arg1: memref<256x32xf32, #tpu.memory_space<vmem>>, %arg2: memref<32x512xbf16, #tpu.memory_space<vmem>>, %arg3: memref<1x512xf32, #tpu.memory_space<vmem>>, %arg4: memref<512x128xbf16, #tpu.memory_space<vmem>>, %arg5: memref<1x128xf32, #tpu.memory_space<vmem>>, %arg6: memref<256x128xf32, #tpu.memory_space<vmem>>) attributes {dimension_semantics = [#tpu.dimension_semantics<parallel>], iteration_bounds = array<i64: 1>, scalar_prefetch = 0 : i64, scratch_operands = 0 : i64, tpu.core_type = #tpu.core_type<tc>, window_params = [{transform_indices = @transform_0, window_bounds = array<i64: 256, 32>}, {pipeline_mode = #tpu.pipeline_mode<synchronous>, transform_indices = @transform_1, window_bounds = array<i64: 32, 512>}, {pipeline_mode = #tpu.pipeline_mode<synchronous>, transform_indices = @transform_2, window_bounds = array<i64: 1, 512>}, {pipeline_mode = #tpu.pipeline_mode<synchronous>, transform_indices = @transform_3, window_bounds = array<i64: 512, 128>}, {pipeline_mode = #tpu.pipeline_mode<synchronous>, transform_indices = @transform_4, window_bounds = array<i64: 1, 128>}, {transform_indices = @transform_5, window_bounds = array<i64: 256, 128>}]} {
    %c0 = arith.constant 0 : index
    %c0_0 = arith.constant 0 : index
    %0 = vector.load %arg1[%c0, %c0_0] : memref<256x32xf32, #tpu.memory_space<vmem>>, vector<256x32xf32>
    %1 = arith.truncf %0 : vector<256x32xf32> to vector<256x32xbf16>
    %c0_1 = arith.constant 0 : index
    %c0_2 = arith.constant 0 : index
    %2 = vector.load %arg2[%c0_1, %c0_2] : memref<32x512xbf16, #tpu.memory_space<vmem>>, vector<32x512xbf16>
    %cst = arith.constant dense<0.000000e+00> : vector<256x512xf32>
    %3 = tpu.matmul %1, %2, %cst {dimension_numbers = #tpu.dot_dimension_numbers<[1], [0], [0], [1], [0, 0, 1, 1], [], []>} : vector<256x32xbf16>, vector<32x512xbf16>, vector<256x512xf32> -> vector<256x512xf32>
    %c0_3 = arith.constant 0 : index
    %c0_4 = arith.constant 0 : index
    %4 = vector.load %arg3[%c0_3, %c0_4] : memref<1x512xf32, #tpu.memory_space<vmem>>, vector<1x512xf32>
    %5 = vector.broadcast %4 : vector<1x512xf32> to vector<256x512xf32>
    %6 = arith.addf %3, %5 : vector<256x512xf32>
    %cst_5 = arith.constant 0.000000e+00 : f32
    %7 = vector.broadcast %cst_5 : f32 to vector<256x512xf32>
    %8 = arith.maximumf %6, %7 : vector<256x512xf32>
    %9 = arith.truncf %8 : vector<256x512xf32> to vector<256x512xbf16>
    %c0_6 = arith.constant 0 : index
    %c0_7 = arith.constant 0 : index
    %10 = vector.load %arg4[%c0_6, %c0_7] : memref<512x128xbf16, #tpu.memory_space<vmem>>, vector<512x128xbf16>
    %cst_8 = arith.constant dense<0.000000e+00> : vector<256x128xf32>
    %11 = tpu.matmul %9, %10, %cst_8 {dimension_numbers = #tpu.dot_dimension_numbers<[1], [0], [0], [1], [0, 0, 1, 1], [], []>} : vector<256x512xbf16>, vector<512x128xbf16>, vector<256x128xf32> -> vector<256x128xf32>
    %c0_9 = arith.constant 0 : index
    %c0_10 = arith.constant 0 : index
    %12 = vector.load %arg5[%c0_9, %c0_10] : memref<1x128xf32, #tpu.memory_space<vmem>>, vector<1x128xf32>
    %13 = vector.broadcast %12 : vector<1x128xf32> to vector<256x128xf32>
    %14 = arith.addf %11, %13 : vector<256x128xf32>
    %cst_11 = arith.constant 0.000000e+00 : f32
    %15 = vector.broadcast %cst_11 : f32 to vector<256x128xf32>
    %16 = arith.maximumf %14, %15 : vector<256x128xf32>
    %c0_12 = arith.constant 0 : index
    %c0_13 = arith.constant 0 : index
    %17 = vector.load %arg6[%c0_12, %c0_13] : memref<256x128xf32, #tpu.memory_space<vmem>>, vector<256x128xf32>
    tpu.vector_store %arg6[%c0_12, %c0_13], %16 {strides = array<i32>} : memref<256x128xf32, #tpu.memory_space<vmem>>, vector<256x128xf32>,
    return
  }
  func.func @transform_0(%arg0: i32) -> (i32, i32) {
    %c0_i32 = arith.constant 0 : i32
    %c0_i32_0 = arith.constant 0 : i32
    return %arg0, %c0_i32 : i32, i32
  }
  func.func @transform_1(%arg0: i32) -> (i32, i32) {
    %c0_i32 = arith.constant 0 : i32
    %c0_i32_0 = arith.constant 0 : i32
    %c0_i32_1 = arith.constant 0 : i32
    return %c0_i32, %c0_i32_0 : i32, i32
  }
  func.func @transform_2(%arg0: i32) -> (i32, i32) {
    %c0_i32 = arith.constant 0 : i32
    %c0_i32_0 = arith.constant 0 : i32
    %c0_i32_1 = arith.constant 0 : i32
    return %c0_i32, %c0_i32_0 : i32, i32
  }
  func.func @transform_3(%arg0: i32) -> (i32, i32) {
    %c0_i32 = arith.constant 0 : i32
    %c0_i32_0 = arith.constant 0 : i32
    %c0_i32_1 = arith.constant 0 : i32
    return %c0_i32, %c0_i32_0 : i32, i32
  }
  func.func @transform_4(%arg0: i32) -> (i32, i32) {
    %c0_i32 = arith.constant 0 : i32
    %c0_i32_0 = arith.constant 0 : i32
    %c0_i32_1 = arith.constant 0 : i32
    return %c0_i32, %c0_i32_0 : i32, i32
  }
  func.func @transform_5(%arg0: i32) -> (i32, i32) {
    %c0_i32 = arith.constant 0 : i32
    %c0_i32_0 = arith.constant 0 : i32
    return %arg0, %c0_i32 : i32, i32
  }
}

module attributes {stable_mosaic.version = 11 : i64} {
  func.func @obs_encoder_kernel(%arg0: i32, %arg1: memref<256x32xf32, #tpu.memory_space<vmem>>, %arg2: memref<32x512xbf16, #tpu.memory_space<vmem>>, %arg3: memref<1x512xf32, #tpu.memory_space<vmem>>, %arg4: memref<512x128xbf16, #tpu.memory_space<vmem>>, %arg5: memref<1x128xf32, #tpu.memory_space<vmem>>, %arg6: memref<256x128xf32, #tpu.memory_space<vmem>>) attributes {dimension_semantics = [#tpu.dimension_semantics<parallel>], iteration_bounds = array<i64: 1>, scalar_prefetch = 0 : i64, scratch_operands = 0 : i64, tpu.core_type = #tpu.core_type<tc>, window_params = [{transform_indices = @transform_0, window_bounds = array<i64: 256, 32>}, {pipeline_mode = #tpu.pipeline_mode<synchronous>, transform_indices = @transform_1, window_bounds = array<i64: 32, 512>}, {pipeline_mode = #tpu.pipeline_mode<synchronous>, transform_indices = @transform_2, window_bounds = array<i64: 1, 512>}, {pipeline_mode = #tpu.pipeline_mode<synchronous>, transform_indices = @transform_3, window_bounds = array<i64: 512, 128>}, {pipeline_mode = #tpu.pipeline_mode<synchronous>, transform_indices = @transform_4, window_bounds = array<i64: 1, 128>}, {transform_indices = @transform_5, window_bounds = array<i64: 256, 128>}]} {
    %c0 = arith.constant 0 : index
    %c0_0 = arith.constant 0 : index
    %0 = vector.load %arg1[%c0, %c0_0] : memref<256x32xf32, #tpu.memory_space<vmem>>, vector<256x32xf32>
    %1 = arith.truncf %0 : vector<256x32xf32> to vector<256x32xbf16>
    %c0_1 = arith.constant 0 : index
    %c0_2 = arith.constant 0 : index
    %2 = vector.load %arg2[%c0_1, %c0_2] : memref<32x512xbf16, #tpu.memory_space<vmem>>, vector<32x512xbf16>
    %cst = arith.constant dense<0.000000e+00> : vector<256x512xf32>
    %3 = tpu.matmul %1, %2, %cst {dimension_numbers = #tpu.dot_dimension_numbers<[1], [0], [0], [1], [0, 0, 1, 1], [], []>} : vector<256x32xbf16>, vector<32x512xbf16>, vector<256x512xf32> -> vector<256x512xf32>
    %c0_3 = arith.constant 0 : index
    %c0_4 = arith.constant 0 : index
    %4 = vector.load %arg3[%c0_3, %c0_4] : memref<1x512xf32, #tpu.memory_space<vmem>>, vector<1x512xf32>
    %5 = vector.broadcast %4 : vector<1x512xf32> to vector<256x512xf32>
    %6 = arith.addf %3, %5 : vector<256x512xf32>
    %cst_5 = arith.constant 0.000000e+00 : f32
    %7 = vector.broadcast %cst_5 : f32 to vector<256x512xf32>
    %8 = arith.maximumf %6, %7 : vector<256x512xf32>
    %9 = arith.truncf %8 : vector<256x512xf32> to vector<256x512xbf16>
    %c0_6 = arith.constant 0 : index
    %c0_7 = arith.constant 0 : index
    %10 = vector.load %arg4[%c0_6, %c0_7] : memref<512x128xbf16, #tpu.memory_space<vmem>>, vector<512x128xbf16>
    %cst_8 = arith.constant dense<0.000000e+00> : vector<256x128xf32>
    %11 = tpu.matmul %9, %10, %cst_8 {dimension_numbers = #tpu.dot_dimension_numbers<[1], [0], [0], [1], [0, 0, 1, 1], [], []>} : vector<256x512xbf16>, vector<512x128xbf16>, vector<256x128xf32> -> vector<256x128xf32>
    %c0_9 = arith.constant 0 : index
    %c0_10 = arith.constant 0 : index
    %12 = vector.load %arg5[%c0_9, %c0_10] : memref<1x128xf32, #tpu.memory_space<vmem>>, vector<1x128xf32>
    %13 = vector.broadcast %12 : vector<1x128xf32> to vector<256x128xf32>
    %14 = arith.addf %11, %13 : vector<256x128xf32>
    %cst_11 = arith.constant 0.000000e+00 : f32
    %15 = vector.broadcast %cst_11 : f32 to vector<256x128xf32>
    %16 = arith.maximumf %14, %15 : vector<256x128xf32>
    %c0_12 = arith.constant 0 : index
    %c0_13 = arith.constant 0 : index
    %17 = vector.load %arg6[%c0_12, %c0_13] : memref<256x128xf32, #tpu.memory_space<vmem>>, vector<256x128xf32>
    tpu.vector_store %arg6[%c0_12, %c0_13], %16 {strides = array<i32>} : memref<256x128xf32, #tpu.memory_space<vmem>>, vector<256x128xf32>,
    return
  }
  func.func @transform_0(%arg0: i32) -> (i32, i32) {
    %c0_i32 = arith.constant 0 : i32
    %c0_i32_0 = arith.constant 0 : i32
    return %arg0, %c0_i32 : i32, i32
  }
  func.func @transform_1(%arg0: i32) -> (i32, i32) {
    %c0_i32 = arith.constant 0 : i32
    %c0_i32_0 = arith.constant 0 : i32
    %c0_i32_1 = arith.constant 0 : i32
    return %c0_i32, %c0_i32_0 : i32, i32
  }
  func.func @transform_2(%arg0: i32) -> (i32, i32) {
    %c0_i32 = arith.constant 0 : i32
    %c0_i32_0 = arith.constant 0 : i32
    %c0_i32_1 = arith.constant 0 : i32
    return %c0_i32, %c0_i32_0 : i32, i32
  }
  func.func @transform_3(%arg0: i32) -> (i32, i32) {
    %c0_i32 = arith.constant 0 : i32
    %c0_i32_0 = arith.constant 0 : i32
    %c0_i32_1 = arith.constant 0 : i32
    return %c0_i32, %c0_i32_0 : i32, i32
  }
  func.func @transform_4(%arg0: i32) -> (i32, i32) {
    %c0_i32 = arith.constant 0 : i32
    %c0_i32_0 = arith.constant 0 : i32
    %c0_i32_1 = arith.constant 0 : i32
    return %c0_i32, %c0_i32_0 : i32, i32
  }
  func.func @transform_5(%arg0: i32) -> (i32, i32) {
    %c0_i32 = arith.constant 0 : i32
    %c0_i32_0 = arith.constant 0 : i32
    return %arg0, %c0_i32 : i32, i32
  }
}

</mosaic_0001>

<llo_original>
// kernel: tpu_custom_call.1
$region0: #{tpu_custom_call.1}
  #allocation0 [shape = 'u32[]', space=smem, size = 0x4, offset = 0x4, fixed_abs, tag = 'smem constant byte address 0x4 - core index']
  #allocation1 [shape = 'u32[144,128]{1,0:T(1,128)}', space=vmem, size = 0x12000, scoped, tag = 'internal scratch']
  %s0 = inlined_call_operand.vmem [shape: f32[256,32], index: 0, kind: input, shape index: {}]
  %s1 = inlined_call_operand.vmem [shape: bf16[32,512], index: 1, kind: input, shape index: {}]
  %s2 = inlined_call_operand.vmem [shape: f32[1,512], index: 2, kind: input, shape index: {}]
  %s3 = inlined_call_operand.vmem [shape: bf16[512,128], index: 3, kind: input, shape index: {}]
  %s4 = inlined_call_operand.vmem [shape: f32[1,128], index: 4, kind: input, shape index: {}]
  %s5 = inlined_call_operand.hbm [shape: f32[256,128], index: 5, kind: output, shape index: {}]
  %s6 = sld [smem:[#allocation0]]
  $region30: #{tpu_custom_call.1} parent=0
    _
  %s8 = ssub.s32 1, %s6
  %s9 = scalar_select 0, %s8, %s6
  $region1: #{tpu_custom_call.1} parent=0
    #allocation2 [shape = 'u8[131072]{0}', space=vmem, size = 0x20000, scoped, tag = 'output window, operand 0, single buffered']
    #allocation3 [shape = 's32[1]{0}', space=sflag, size = 0x4, scoped, tag = 'scoped memory for tpu_custom_call.1']
    %10 = vsyncpa [#allocation3], 0
    // Predicated region
    $region2: #{tpu_custom_call.1} parent=1 // pred_check
      _
    $region3: #{tpu_custom_call.1} parent=1 // pred_check_branch
      %12 = sbr.rel (0) target = $region5
    $region4: #{tpu_custom_call.1} parent=1 // pred_region
      _
    $region5: #{tpu_custom_call.1} parent=1 // pred_fallthru
      _
    // Predicated region
    $region6: #{tpu_custom_call.1} parent=1 // pred_check
      _
    $region7: #{tpu_custom_call.1} parent=1 // pred_check_branch
      %14 = sbr.rel (0) target = $region9
    $region8: #{tpu_custom_call.1} parent=1 // pred_region
      _
    $region9: #{tpu_custom_call.1} parent=1 // pred_fallthru
      _
    // Predicated region
    $region10: #{tpu_custom_call.1} parent=1 // pred_check
      _
    $region11: #{tpu_custom_call.1} parent=1 // pred_check_branch
      %16 = sbr.rel (0) target = $region13
    $region12: #{tpu_custom_call.1} parent=1 // pred_region
      _
    $region13: #{tpu_custom_call.1} parent=1 // pred_fallthru
      _
    // Predicated region
    $region14: #{tpu_custom_call.1} parent=1 // pred_check
      _
    $region15: #{tpu_custom_call.1} parent=1 // pred_check_branch
      %18 = sbr.rel (0) target = $region17
    $region16: #{tpu_custom_call.1} parent=1 // pred_region
      _
    $region17: #{tpu_custom_call.1} parent=1 // pred_fallthru
      _
    // Predicated region
    $region18: #{tpu_custom_call.1} parent=1 // pred_check
      _
    $region19: #{tpu_custom_call.1} parent=1 // pred_check_branch
      %20 = sbr.rel (0) target = $region21
    $region20: #{tpu_custom_call.1} parent=1 // pred_region
      _
    $region21: #{tpu_custom_call.1} parent=1 // pred_fallthru
      _
    %v22 = vld [vmem:[%s0] sm:$0xff]
    %v23 = vld [vmem:[%s0 + $0x8] sm:$0xff]
    %v24 = vld [vmem:[%s0 + $0x10] sm:$0xff]
    %v25 = vld [vmem:[%s0 + $0x18] sm:$0xff]
    %v26 = vld [vmem:[%s0 + $0x20] sm:$0xff]
    %v27 = vld [vmem:[%s0 + $0x28] sm:$0xff]
    %v28 = vld [vmem:[%s0 + $0x30] sm:$0xff]
    %v29 = vld [vmem:[%s0 + $0x38] sm:$0xff]
    %v30 = vld [vmem:[%s0 + $0x40] sm:$0xff]
    %v31 = vld [vmem:[%s0 + $0x48] sm:$0xff]
    %v32 = vld [vmem:[%s0 + $0x50] sm:$0xff]
    %v33 = vld [vmem:[%s0 + $0x58] sm:$0xff]
    %v34 = vld [vmem:[%s0 + $0x60] sm:$0xff]
    %v35 = vld [vmem:[%s0 + $0x68] sm:$0xff]
    %v36 = vld [vmem:[%s0 + $0x70] sm:$0xff]
    %v37 = vld [vmem:[%s0 + $0x78] sm:$0xff]
    %v38 = vld [vmem:[%s0 + $0x80] sm:$0xff]
    %v39 = vld [vmem:[%s0 + $0x88] sm:$0xff]
    %v40 = vld [vmem:[%s0 + $0x90] sm:$0xff]
    %v41 = vld [vmem:[%s0 + $0x98] sm:$0xff]
    %v42 = vld [vmem:[%s0 + $0xa0] sm:$0xff]
    %v43 = vld [vmem:[%s0 + $0xa8] sm:$0xff]
    %v44 = vld [vmem:[%s0 + $0xb0] sm:$0xff]
    %v45 = vld [vmem:[%s0 + $0xb8] sm:$0xff]
    %v46 = vld [vmem:[%s0 + $0xc0] sm:$0xff]
    %v47 = vld [vmem:[%s0 + $0xc8] sm:$0xff]
    %v48 = vld [vmem:[%s0 + $0xd0] sm:$0xff]
    %v49 = vld [vmem:[%s0 + $0xd8] sm:$0xff]
    %v50 = vld [vmem:[%s0 + $0xe0] sm:$0xff]
    %v51 = vld [vmem:[%s0 + $0xe8] sm:$0xff]
    %v52 = vld [vmem:[%s0 + $0xf0] sm:$0xff]
    %v53 = vld [vmem:[%s0 + $0xf8] sm:$0xff]
    %v54 = vpack.c.bf16 %v23, %v22
    %v55 = vpack.c.bf16 %v25, %v24
    %v56 = vpack.c.bf16 %v27, %v26
    %v57 = vpack.c.bf16 %v29, %v28
    %v58 = vpack.c.bf16 %v31, %v30
    %v59 = vpack.c.bf16 %v33, %v32
    %v60 = vpack.c.bf16 %v35, %v34
    %v61 = vpack.c.bf16 %v37, %v36
    %v62 = vpack.c.bf16 %v39, %v38
    %v63 = vpack.c.bf16 %v41, %v40
    %v64 = vpack.c.bf16 %v43, %v42
    %v65 = vpack.c.bf16 %v45, %v44
    %v66 = vpack.c.bf16 %v47, %v46
    %v67 = vpack.c.bf16 %v49, %v48
    %v68 = vpack.c.bf16 %v51, %v50
    %v69 = vpack.c.bf16 %v53, %v52
    %v70 = vld [vmem:[%s1] sm:$0xff]
    %v71 = vld [vmem:[%s1 + $0x8] sm:$0xff]
    %v72 = vld [vmem:[%s1 + $0x10] sm:$0xff]
    %v73 = vld [vmem:[%s1 + $0x18] sm:$0xff]
    %v74 = vld [vmem:[%s1 + $0x20] sm:$0xff]
    %v75 = vld [vmem:[%s1 + $0x28] sm:$0xff]
    %v76 = vld [vmem:[%s1 + $0x30] sm:$0xff]
    %v77 = vld [vmem:[%s1 + $0x38] sm:$0xff]
    %v78 = vld [vmem:[%s2] sm:$0xf]
    %v80 = vlaneseq
    %v81 = vshrl.u32 %v80, 7
    %v82 = vsub.s32 0, %v81
    %v83 = vrot.slane %v78, %v82
    %v84 = vlaneseq
    %v85 = vshrl.u32 %v84, 7
    %v86 = vsub.s32 1, %v85
    %v87 = vrot.slane %v78, %v86
    %v88 = vlaneseq
    %v89 = vshrl.u32 %v88, 7
    %v90 = vsub.s32 2, %v89
    %v91 = vrot.slane %v78, %v90
    %v92 = vlaneseq
    %v93 = vshrl.u32 %v92, 7
    %v94 = vsub.s32 3, %v93
    %v95 = vrot.slane %v78, %v94
    %v108 = vunpack.c.l.b16 %v70
    %v109 = vunpack.c.h.b16 %v70
    %v110 = vunpack.c.l.b16 %v71
    %v111 = vunpack.c.h.b16 %v71
    %v112 = vunpack.c.l.b16 %v72
    %v113 = vunpack.c.h.b16 %v72
    %v114 = vunpack.c.l.b16 %v73
    %v115 = vunpack.c.h.b16 %v73
    %v116 = vunpack.c.l.b16 %v74
    %v117 = vunpack.c.h.b16 %v74
    %v118 = vunpack.c.l.b16 %v75
    %v119 = vunpack.c.h.b16 %v75
    %v120 = vunpack.c.l.b16 %v76
    %v121 = vunpack.c.h.b16 %v76
    %v122 = vunpack.c.l.b16 %v77
    %v123 = vunpack.c.h.b16 %v77
    %v124 = vpack.c.b16 %v112, %v108
    %v125 = vpack.c.b16 %v113, %v109
    %v126 = vpack.c.b16 %v114, %v110
    %v127 = vpack.c.b16 %v115, %v111
    %v128 = vpack.c.b16 %v120, %v116
    %v129 = vpack.c.b16 %v121, %v117
    %v130 = vpack.c.b16 %v122, %v118
    %v131 = vpack.c.b16 %v123, %v119
    %vm140 = vcmask 261120
    %v142 = vsel %vm140, %v54, 0
    %v145 = vsel %vm140, %v55, 0
    %v148 = vsel %vm140, %v56, 0
    %v151 = vsel %vm140, %v57, 0
    %v154 = vsel %vm140, %v58, 0
    %v157 = vsel %vm140, %v59, 0
    %v160 = vsel %vm140, %v60, 0
    %v163 = vsel %vm140, %v61, 0
    %v166 = vsel %vm140, %v62, 0
    %v169 = vsel %vm140, %v63, 0
    %v172 = vsel %vm140, %v64, 0
    %v175 = vsel %vm140, %v65, 0
    %v178 = vsel %vm140, %v66, 0
    %v181 = vsel %vm140, %v67, 0
    %v184 = vsel %vm140, %v68, 0
    %v187 = vsel %vm140, %v69, 0
    %189 = vmatprep.subr.bf16.mxu0 %v125
    %190 = vmatpush1.bf16.msra.mxu0 %v124
    %191 = vmatprep.subr.bf16.mxu0 %v129
    %192 = vmatpush1.bf16.msra.mxu0 %v128
    %193 = vmatprep.subr.bf16.mxu0 0
    %194 = vmatpush1.bf16.msra.mxu0 0
    %195 = vmatprep.subr.bf16.mxu0 0
    %196 = vmatpush1.bf16.msra.mxu0 0
    %197 = vmatprep.subr.bf16.mxu0 0
    %198 = vmatpush1.bf16.msra.mxu0 0
    %199 = vmatprep.subr.bf16.mxu0 0
    %200 = vmatpush1.bf16.msra.mxu0 0
    %201 = vmatprep.subr.bf16.mxu0 0
    %202 = vmatpush1.bf16.msra.mxu0 0
    %203 = vmatprep.subr.bf16.mxu0 0
    %204 = vmatpush1.bf16.msra.mxu0 0
    %205 = vmatprep.subr.bf16.mxu0 0
    %206 = vmatpush1.bf16.msra.mxu0 0
    %207 = vmatprep.subr.bf16.mxu0 0
    %208 = vmatpush1.bf16.msra.mxu0 0
    %209 = vmatprep.subr.bf16.mxu0 0
    %210 = vmatpush1.bf16.msra.mxu0 0
    %211 = vmatprep.subr.bf16.mxu0 0
    %212 = vmatpush1.bf16.msra.mxu0 0
    %213 = vmatprep.subr.bf16.mxu0 0
    %214 = vmatpush1.bf16.msra.mxu0 0
    %215 = vmatprep.subr.bf16.mxu0 0
    %216 = vmatpush1.bf16.msra.mxu0 0
    %217 = vmatprep.subr.bf16.mxu0 0
    %218 = vmatpush1.bf16.msra.mxu0 0
    %219 = vmatprep.subr.bf16.mxu0 0
    %220 = vmatpush1.bf16.msra.mxu0 0
    %221 = vmatprep.mubr.bf16.mxu0 0
    %222 = vmatmul.mubr.bf16.gmra.mrb[0].mxu0 %v142
    %v223 = vpop.f32.mrb[0].mxu0
    %v224 = vadd.f32 %v83, %v223
    %v225 = vpop.f32.mrb[0].mxu0
    %v226 = vadd.f32 %v87, %v225
    %v227 = vpop.f32.mrb[0].mxu0
    %v228 = vadd.f32 %v83, %v227
    %v229 = vpop.f32.mrb[0].mxu0
    %v230 = vadd.f32 %v87, %v229
    %231 = vmatprep.mubr.bf16.mxu0 0
    %232 = vmatmul.mubr.bf16.gmra.mrb[0].mxu0 %v145
    %v233 = vpop.f32.mrb[0].mxu0
    %v234 = vadd.f32 %v83, %v233
    %v235 = vpop.f32.mrb[0].mxu0
    %v236 = vadd.f32 %v87, %v235
    %v237 = vpop.f32.mrb[0].mxu0
    %v238 = vadd.f32 %v83, %v237
    %v239 = vpop.f32.mrb[0].mxu0
    %v240 = vadd.f32 %v87, %v239
    %241 = vmatprep.mubr.bf16.mxu0 0
    %242 = vmatmul.mubr.bf16.gmra.mrb[0].mxu0 %v148
    %v243 = vpop.f32.mrb[0].mxu0
    %v244 = vadd.f32 %v83, %v243
    %v245 = vpop.f32.mrb[0].mxu0
    %v246 = vadd.f32 %v87, %v245
    %v247 = vpop.f32.mrb[0].mxu0
    %v248 = vadd.f32 %v83, %v247
    %v249 = vpop.f32.mrb[0].mxu0
    %v250 = vadd.f32 %v87, %v249
    %251 = vmatprep.mubr.bf16.mxu0 0
    %252 = vmatmul.mubr.bf16.gmra.mrb[0].mxu0 %v151
    %v253 = vpop.f32.mrb[0].mxu0
    %v254 = vadd.f32 %v83, %v253
    %v255 = vpop.f32.mrb[0].mxu0
    %v256 = vadd.f32 %v87, %v255
    %v257 = vpop.f32.mrb[0].mxu0
    %v258 = vadd.f32 %v83, %v257
    %v259 = vpop.f32.mrb[0].mxu0
    %v260 = vadd.f32 %v87, %v259
    %261 = vmatprep.mubr.bf16.mxu0 0
    %262 = vmatmul.mubr.bf16.gmra.mrb[0].mxu0 %v154
    %v263 = vpop.f32.mrb[0].mxu0
    %v264 = vadd.f32 %v83, %v263
    %v265 = vpop.f32.mrb[0].mxu0
    %v266 = vadd.f32 %v87, %v265
    %v267 = vpop.f32.mrb[0].mxu0
    %v268 = vadd.f32 %v83, %v267
    %v269 = vpop.f32.mrb[0].mxu0
    %v270 = vadd.f32 %v87, %v269
    %271 = vmatprep.mubr.bf16.mxu0 0
    %272 = vmatmul.mubr.bf16.gmra.mrb[0].mxu0 %v157
    %v273 = vpop.f32.mrb[0].mxu0
    %v274 = vadd.f32 %v83, %v273
    %v275 = vpop.f32.mrb[0].mxu0
    %v276 = vadd.f32 %v87, %v275
    %v277 = vpop.f32.mrb[0].mxu0
    %v278 = vadd.f32 %v83, %v277
    %v279 = vpop.f32.mrb[0].mxu0
    %v280 = vadd.f32 %v87, %v279
    %281 = vmatprep.mubr.bf16.mxu0 0
    %282 = vmatmul.mubr.bf16.gmra.mrb[0].mxu0 %v160
    %v283 = vpop.f32.mrb[0].mxu0
    %v284 = vadd.f32 %v83, %v283
    %v285 = vpop.f32.mrb[0].mxu0
    %v286 = vadd.f32 %v87, %v285
    %v287 = vpop.f32.mrb[0].mxu0
    %v288 = vadd.f32 %v83, %v287
    %v289 = vpop.f32.mrb[0].mxu0
    %v290 = vadd.f32 %v87, %v289
    %291 = vmatprep.mubr.bf16.mxu0 0
    %292 = vmatmul.mubr.bf16.gmra.mrb[0].mxu0 %v163
    %v293 = vpop.f32.mrb[0].mxu0
    %v294 = vadd.f32 %v83, %v293
    %v295 = vpop.f32.mrb[0].mxu0
    %v296 = vadd.f32 %v87, %v295
    %v297 = vpop.f32.mrb[0].mxu0
    %v298 = vadd.f32 %v83, %v297
    %v299 = vpop.f32.mrb[0].mxu0
    %v300 = vadd.f32 %v87, %v299
    %301 = vmatprep.mubr.bf16.mxu0 0
    %302 = vmatmul.mubr.bf16.gmra.mrb[0].mxu0 %v166
    %v303 = vpop.f32.mrb[0].mxu0
    %v304 = vadd.f32 %v83, %v303
    %v305 = vpop.f32.mrb[0].mxu0
    %v306 = vadd.f32 %v87, %v305
    %v307 = vpop.f32.mrb[0].mxu0
    %v308 = vadd.f32 %v83, %v307
    %v309 = vpop.f32.mrb[0].mxu0
    %v310 = vadd.f32 %v87, %v309
    %311 = vmatprep.mubr.bf16.mxu0 0
    %312 = vmatmul.mubr.bf16.gmra.mrb[0].mxu0 %v169
    %v313 = vpop.f32.mrb[0].mxu0
    %v314 = vadd.f32 %v83, %v313
    %v315 = vpop.f32.mrb[0].mxu0
    %v316 = vadd.f32 %v87, %v315
    %v317 = vpop.f32.mrb[0].mxu0
    %v318 = vadd.f32 %v83, %v317
    %v319 = vpop.f32.mrb[0].mxu0
    %v320 = vadd.f32 %v87, %v319
    %321 = vmatprep.mubr.bf16.mxu0 0
    %322 = vmatmul.mubr.bf16.gmra.mrb[0].mxu0 %v172
    %v323 = vpop.f32.mrb[0].mxu0
    %v324 = vadd.f32 %v83, %v323
    %v325 = vpop.f32.mrb[0].mxu0
    %v326 = vadd.f32 %v87, %v325
    %v327 = vpop.f32.mrb[0].mxu0
    %v328 = vadd.f32 %v83, %v327
    %v329 = vpop.f32.mrb[0].mxu0
    %v330 = vadd.f32 %v87, %v329
    %331 = vmatprep.mubr.bf16.mxu0 0
    %332 = vmatmul.mubr.bf16.gmra.mrb[0].mxu0 %v175
    %v333 = vpop.f32.mrb[0].mxu0
    %v334 = vadd.f32 %v83, %v333
    %v335 = vpop.f32.mrb[0].mxu0
    %v336 = vadd.f32 %v87, %v335
    %v337 = vpop.f32.mrb[0].mxu0
    %v338 = vadd.f32 %v83, %v337
    %v339 = vpop.f32.mrb[0].mxu0
    %v340 = vadd.f32 %v87, %v339
    %341 = vmatprep.mubr.bf16.mxu0 0
    %342 = vmatmul.mubr.bf16.gmra.mrb[0].mxu0 %v178
    %v343 = vpop.f32.mrb[0].mxu0
    %v344 = vadd.f32 %v83, %v343
    %v345 = vpop.f32.mrb[0].mxu0
    %v346 = vadd.f32 %v87, %v345
    %v347 = vpop.f32.mrb[0].mxu0
    %v348 = vadd.f32 %v83, %v347
    %v349 = vpop.f32.mrb[0].mxu0
    %v350 = vadd.f32 %v87, %v349
    %351 = vmatprep.mubr.bf16.mxu0 0
    %352 = vmatmul.mubr.bf16.gmra.mrb[0].mxu0 %v181
    %v353 = vpop.f32.mrb[0].mxu0
    %v354 = vadd.f32 %v83, %v353
    %v355 = vpop.f32.mrb[0].mxu0
    %v356 = vadd.f32 %v87, %v355
    %v357 = vpop.f32.mrb[0].mxu0
    %v358 = vadd.f32 %v83, %v357
    %v359 = vpop.f32.mrb[0].mxu0
    %v360 = vadd.f32 %v87, %v359
    %361 = vmatprep.mubr.bf16.mxu0 0
    %362 = vmatmul.mubr.bf16.gmra.mrb[0].mxu0 %v184
    %v363 = vpop.f32.mrb[0].mxu0
    %v364 = vadd.f32 %v83, %v363
    %v365 = vpop.f32.mrb[0].mxu0
    %v366 = vadd.f32 %v87, %v365
    %v367 = vpop.f32.mrb[0].mxu0
    %v368 = vadd.f32 %v83, %v367
    %v369 = vpop.f32.mrb[0].mxu0
    %v370 = vadd.f32 %v87, %v369
    %371 = vmatprep.mubr.bf16.mxu0 0
    %372 = vmatmul.mubr.bf16.gmra.mrb[0].mxu0 %v187
    %v373 = vpop.f32.mrb[0].mxu0
    %v374 = vadd.f32 %v83, %v373
    %v375 = vpop.f32.mrb[0].mxu0
    %v376 = vadd.f32 %v87, %v375
    %v377 = vpop.f32.mrb[0].mxu0
    %v378 = vadd.f32 %v83, %v377
    %v379 = vpop.f32.mrb[0].mxu0
    %v380 = vadd.f32 %v87, %v379
    %381 = vdwg.mxu0
    %382 = vmatprep.subr.bf16.mxu0 %v127
    %383 = vmatpush1.bf16.msra.mxu0 %v126
    %384 = vmatprep.subr.bf16.mxu0 %v131
    %385 = vmatpush1.bf16.msra.mxu0 %v130
    %386 = vmatprep.subr.bf16.mxu0 0
    %387 = vmatpush1.bf16.msra.mxu0 0
    %388 = vmatprep.subr.bf16.mxu0 0
    %389 = vmatpush1.bf16.msra.mxu0 0
    %390 = vmatprep.subr.bf16.mxu0 0
    %391 = vmatpush1.bf16.msra.mxu0 0
    %392 = vmatprep.subr.bf16.mxu0 0
    %393 = vmatpush1.bf16.msra.mxu0 0
    %394 = vmatprep.subr.bf16.mxu0 0
    %395 = vmatpush1.bf16.msra.mxu0 0
    %396 = vmatprep.subr.bf16.mxu0 0
    %397 = vmatpush1.bf16.msra.mxu0 0
    %398 = vmatprep.subr.bf16.mxu0 0
    %399 = vmatpush1.bf16.msra.mxu0 0
    %400 = vmatprep.subr.bf16.mxu0 0
    %401 = vmatpush1.bf16.msra.mxu0 0
    %402 = vmatprep.subr.bf16.mxu0 0
    %403 = vmatpush1.bf16.msra.mxu0 0
    %404 = vmatprep.subr.bf16.mxu0 0
    %405 = vmatpush1.bf16.msra.mxu0 0
    %406 = vmatprep.subr.bf16.mxu0 0
    %407 = vmatpush1.bf16.msra.mxu0 0
    %408 = vmatprep.subr.bf16.mxu0 0
    %409 = vmatpush1.bf16.msra.mxu0 0
    %410 = vmatprep.subr.bf16.mxu0 0
    %411 = vmatpush1.bf16.msra.mxu0 0
    %412 = vmatprep.subr.bf16.mxu0 0
    %413 = vmatpush1.bf16.msra.mxu0 0
    %414 = vmatprep.mubr.bf16.mxu0 0
    %415 = vmatmul.mubr.bf16.gmra.mrb[0].mxu0 %v142
    %v416 = vpop.f32.mrb[0].mxu0
    %v417 = vadd.f32 %v91, %v416
    %v418 = vpop.f32.mrb[0].mxu0
    %v419 = vadd.f32 %v95, %v418
    %v420 = vpop.f32.mrb[0].mxu0
    %v421 = vadd.f32 %v91, %v420
    %v422 = vpop.f32.mrb[0].mxu0
    %v423 = vadd.f32 %v95, %v422
    %424 = vmatprep.mubr.bf16.mxu0 0
    %425 = vmatmul.mubr.bf16.gmra.mrb[0].mxu0 %v145
    %v426 = vpop.f32.mrb[0].mxu0
    %v427 = vadd.f32 %v91, %v426
    %v428 = vpop.f32.mrb[0].mxu0
    %v429 = vadd.f32 %v95, %v428
    %v430 = vpop.f32.mrb[0].mxu0
    %v431 = vadd.f32 %v91, %v430
    %v432 = vpop.f32.mrb[0].mxu0
    %v433 = vadd.f32 %v95, %v432
    %434 = vmatprep.mubr.bf16.mxu0 0
    %435 = vmatmul.mubr.bf16.gmra.mrb[0].mxu0 %v148
    %v436 = vpop.f32.mrb[0].mxu0
    %v437 = vadd.f32 %v91, %v436
    %v438 = vpop.f32.mrb[0].mxu0
    %v439 = vadd.f32 %v95, %v438
    %v440 = vpop.f32.mrb[0].mxu0
    %v441 = vadd.f32 %v91, %v440
    %v442 = vpop.f32.mrb[0].mxu0
    %v443 = vadd.f32 %v95, %v442
    %444 = vmatprep.mubr.bf16.mxu0 0
    %445 = vmatmul.mubr.bf16.gmra.mrb[0].mxu0 %v151
    %v446 = vpop.f32.mrb[0].mxu0
    %v447 = vadd.f32 %v91, %v446
    %v448 = vpop.f32.mrb[0].mxu0
    %v449 = vadd.f32 %v95, %v448
    %v450 = vpop.f32.mrb[0].mxu0
    %v451 = vadd.f32 %v91, %v450
    %v452 = vpop.f32.mrb[0].mxu0
    %v453 = vadd.f32 %v95, %v452
    %454 = vmatprep.mubr.bf16.mxu0 0
    %455 = vmatmul.mubr.bf16.gmra.mrb[0].mxu0 %v154
    %v456 = vpop.f32.mrb[0].mxu0
    %v457 = vadd.f32 %v91, %v456
    %v458 = vpop.f32.mrb[0].mxu0
    %v459 = vadd.f32 %v95, %v458
    %v460 = vpop.f32.mrb[0].mxu0
    %v461 = vadd.f32 %v91, %v460
    %v462 = vpop.f32.mrb[0].mxu0
    %v463 = vadd.f32 %v95, %v462
    %464 = vmatprep.mubr.bf16.mxu0 0
    %465 = vmatmul.mubr.bf16.gmra.mrb[0].mxu0 %v157
    %v466 = vpop.f32.mrb[0].mxu0
    %v467 = vadd.f32 %v91, %v466
    %v468 = vpop.f32.mrb[0].mxu0
    %v469 = vadd.f32 %v95, %v468
    %v470 = vpop.f32.mrb[0].mxu0
    %v471 = vadd.f32 %v91, %v470
    %v472 = vpop.f32.mrb[0].mxu0
    %v473 = vadd.f32 %v95, %v472
    %474 = vmatprep.mubr.bf16.mxu0 0
    %475 = vmatmul.mubr.bf16.gmra.mrb[0].mxu0 %v160
    %v476 = vpop.f32.mrb[0].mxu0
    %v477 = vadd.f32 %v91, %v476
    %v478 = vpop.f32.mrb[0].mxu0
    %v479 = vadd.f32 %v95, %v478
    %v480 = vpop.f32.mrb[0].mxu0
    %v481 = vadd.f32 %v91, %v480
    %v482 = vpop.f32.mrb[0].mxu0
    %v483 = vadd.f32 %v95, %v482
    %484 = vmatprep.mubr.bf16.mxu0 0
    %485 = vmatmul.mubr.bf16.gmra.mrb[0].mxu0 %v163
    %v486 = vpop.f32.mrb[0].mxu0
    %v487 = vadd.f32 %v91, %v486
    %v488 = vpop.f32.mrb[0].mxu0
    %v489 = vadd.f32 %v95, %v488
    %v490 = vpop.f32.mrb[0].mxu0
    %v491 = vadd.f32 %v91, %v490
    %v492 = vpop.f32.mrb[0].mxu0
    %v493 = vadd.f32 %v95, %v492
    %494 = vmatprep.mubr.bf16.mxu0 0
    %495 = vmatmul.mubr.bf16.gmra.mrb[0].mxu0 %v166
    %v496 = vpop.f32.mrb[0].mxu0
    %v497 = vadd.f32 %v91, %v496
    %v498 = vpop.f32.mrb[0].mxu0
    %v499 = vadd.f32 %v95, %v498
    %v500 = vpop.f32.mrb[0].mxu0
    %v501 = vadd.f32 %v91, %v500
    %v502 = vpop.f32.mrb[0].mxu0
    %v503 = vadd.f32 %v95, %v502
    %504 = vmatprep.mubr.bf16.mxu0 0
    %505 = vmatmul.mubr.bf16.gmra.mrb[0].mxu0 %v169
    %v506 = vpop.f32.mrb[0].mxu0
    %v507 = vadd.f32 %v91, %v506
    %v508 = vpop.f32.mrb[0].mxu0
    %v509 = vadd.f32 %v95, %v508
    %v510 = vpop.f32.mrb[0].mxu0
    %v511 = vadd.f32 %v91, %v510
    %v512 = vpop.f32.mrb[0].mxu0
    %v513 = vadd.f32 %v95, %v512
    %514 = vmatprep.mubr.bf16.mxu0 0
    %515 = vmatmul.mubr.bf16.gmra.mrb[0].mxu0 %v172
    %v516 = vpop.f32.mrb[0].mxu0
    %v517 = vadd.f32 %v91, %v516
    %v518 = vpop.f32.mrb[0].mxu0
    %v519 = vadd.f32 %v95, %v518
    %v520 = vpop.f32.mrb[0].mxu0
    %v521 = vadd.f32 %v91, %v520
    %v522 = vpop.f32.mrb[0].mxu0
    %v523 = vadd.f32 %v95, %v522
    %524 = vmatprep.mubr.bf16.mxu0 0
    %525 = vmatmul.mubr.bf16.gmra.mrb[0].mxu0 %v175
    %v526 = vpop.f32.mrb[0].mxu0
    %v527 = vadd.f32 %v91, %v526
    %v528 = vpop.f32.mrb[0].mxu0
    %v529 = vadd.f32 %v95, %v528
    %v530 = vpop.f32.mrb[0].mxu0
    %v531 = vadd.f32 %v91, %v530
    %v532 = vpop.f32.mrb[0].mxu0
    %v533 = vadd.f32 %v95, %v532
    %534 = vmatprep.mubr.bf16.mxu0 0
    %535 = vmatmul.mubr.bf16.gmra.mrb[0].mxu0 %v178
    %v536 = vpop.f32.mrb[0].mxu0
    %v537 = vadd.f32 %v91, %v536
    %v538 = vpop.f32.mrb[0].mxu0
    %v539 = vadd.f32 %v95, %v538
    %v540 = vpop.f32.mrb[0].mxu0
    %v541 = vadd.f32 %v91, %v540
    %v542 = vpop.f32.mrb[0].mxu0
    %v543 = vadd.f32 %v95, %v542
    %544 = vmatprep.mubr.bf16.mxu0 0
    %545 = vmatmul.mubr.bf16.gmra.mrb[0].mxu0 %v181
    %v546 = vpop.f32.mrb[0].mxu0
    %v547 = vadd.f32 %v91, %v546
    %v548 = vpop.f32.mrb[0].mxu0
    %v549 = vadd.f32 %v95, %v548
    %v550 = vpop.f32.mrb[0].mxu0
    %v551 = vadd.f32 %v91, %v550
    %v552 = vpop.f32.mrb[0].mxu0
    %v553 = vadd.f32 %v95, %v552
    %554 = vmatprep.mubr.bf16.mxu0 0
    %555 = vmatmul.mubr.bf16.gmra.mrb[0].mxu0 %v184
    %v556 = vpop.f32.mrb[0].mxu0
    %v557 = vadd.f32 %v91, %v556
    %v558 = vpop.f32.mrb[0].mxu0
    %v559 = vadd.f32 %v95, %v558
    %v560 = vpop.f32.mrb[0].mxu0
    %v561 = vadd.f32 %v91, %v560
    %v562 = vpop.f32.mrb[0].mxu0
    %v563 = vadd.f32 %v95, %v562
    %564 = vmatprep.mubr.bf16.mxu0 0
    %565 = vmatmul.mubr.bf16.gmra.mrb[0].mxu0 %v187
    %v566 = vpop.f32.mrb[0].mxu0
    %v567 = vadd.f32 %v91, %v566
    %v568 = vpop.f32.mrb[0].mxu0
    %v569 = vadd.f32 %v95, %v568
    %v570 = vpop.f32.mrb[0].mxu0
    %v571 = vadd.f32 %v91, %v570
    %v572 = vpop.f32.mrb[0].mxu0
    %v573 = vadd.f32 %v95, %v572
    %574 = vdwg.mxu0
    %v575 = vmax.f32 %v224, 0.0
    %v576 = vmax.f32 %v226, 0.0
    %v577 = vmax.f32 %v417, 0.0
    %v578 = vmax.f32 %v419, 0.0
    %v579 = vmax.f32 %v228, 0.0
    %v580 = vmax.f32 %v230, 0.0
    %v581 = vmax.f32 %v421, 0.0
    %v582 = vmax.f32 %v423, 0.0
    %v583 = vmax.f32 %v234, 0.0
    %v584 = vmax.f32 %v236, 0.0
    %v585 = vmax.f32 %v427, 0.0
    %v586 = vmax.f32 %v429, 0.0
    %v587 = vmax.f32 %v238, 0.0
    %v588 = vmax.f32 %v240, 0.0
    %v589 = vmax.f32 %v431, 0.0
    %v590 = vmax.f32 %v433, 0.0
    %v591 = vmax.f32 %v244, 0.0
    %v592 = vmax.f32 %v246, 0.0
    %v593 = vmax.f32 %v437, 0.0
    %v594 = vmax.f32 %v439, 0.0
    %v595 = vmax.f32 %v248, 0.0
    %v596 = vmax.f32 %v250, 0.0
    %v597 = vmax.f32 %v441, 0.0
    %v598 = vmax.f32 %v443, 0.0
    %v599 = vmax.f32 %v254, 0.0
    %v600 = vmax.f32 %v256, 0.0
    %v601 = vmax.f32 %v447, 0.0
    %v602 = vmax.f32 %v449, 0.0
    %v603 = vmax.f32 %v258, 0.0
    %v604 = vmax.f32 %v260, 0.0
    %v605 = vmax.f32 %v451, 0.0
    %v606 = vmax.f32 %v453, 0.0
    %v607 = vmax.f32 %v264, 0.0
    %v608 = vmax.f32 %v266, 0.0
    %v609 = vmax.f32 %v457, 0.0
    %v610 = vmax.f32 %v459, 0.0
    %v611 = vmax.f32 %v268, 0.0
    %v612 = vmax.f32 %v270, 0.0
    %v613 = vmax.f32 %v461, 0.0
    %v614 = vmax.f32 %v463, 0.0
    %v615 = vmax.f32 %v274, 0.0
    %v616 = vmax.f32 %v276, 0.0
    %v617 = vmax.f32 %v467, 0.0
    %v618 = vmax.f32 %v469, 0.0
    %v619 = vmax.f32 %v278, 0.0
    %v620 = vmax.f32 %v280, 0.0
    %v621 = vmax.f32 %v471, 0.0
    %v622 = vmax.f32 %v473, 0.0
    %v623 = vmax.f32 %v284, 0.0
    %v624 = vmax.f32 %v286, 0.0
    %v625 = vmax.f32 %v477, 0.0
    %v626 = vmax.f32 %v479, 0.0
    %v627 = vmax.f32 %v288, 0.0
    %v628 = vmax.f32 %v290, 0.0
    %v629 = vmax.f32 %v481, 0.0
    %v630 = vmax.f32 %v483, 0.0
    %v631 = vmax.f32 %v294, 0.0
    %v632 = vmax.f32 %v296, 0.0
    %v633 = vmax.f32 %v487, 0.0
    %v634 = vmax.f32 %v489, 0.0
    %v635 = vmax.f32 %v298, 0.0
    %v636 = vmax.f32 %v300, 0.0
    %v637 = vmax.f32 %v491, 0.0
    %v638 = vmax.f32 %v493, 0.0
    %v639 = vmax.f32 %v304, 0.0
    %v640 = vmax.f32 %v306, 0.0
    %v641 = vmax.f32 %v497, 0.0
    %v642 = vmax.f32 %v499, 0.0
    %v643 = vmax.f32 %v308, 0.0
    %v644 = vmax.f32 %v310, 0.0
    %v645 = vmax.f32 %v501, 0.0
    %v646 = vmax.f32 %v503, 0.0
    %v647 = vmax.f32 %v314, 0.0
    %v648 = vmax.f32 %v316, 0.0
    %v649 = vmax.f32 %v507, 0.0
    %v650 = vmax.f32 %v509, 0.0
    %v651 = vmax.f32 %v318, 0.0
    %v652 = vmax.f32 %v320, 0.0
    %v653 = vmax.f32 %v511, 0.0
    %v654 = vmax.f32 %v513, 0.0
    %v655 = vmax.f32 %v324, 0.0
    %v656 = vmax.f32 %v326, 0.0
    %v657 = vmax.f32 %v517, 0.0
    %v658 = vmax.f32 %v519, 0.0
    %v659 = vmax.f32 %v328, 0.0
    %v660 = vmax.f32 %v330, 0.0
    %v661 = vmax.f32 %v521, 0.0
    %v662 = vmax.f32 %v523, 0.0
    %v663 = vmax.f32 %v334, 0.0
    %v664 = vmax.f32 %v336, 0.0
    %v665 = vmax.f32 %v527, 0.0
    %v666 = vmax.f32 %v529, 0.0
    %v667 = vmax.f32 %v338, 0.0
    %v668 = vmax.f32 %v340, 0.0
    %v669 = vmax.f32 %v531, 0.0
    %v670 = vmax.f32 %v533, 0.0
    %v671 = vmax.f32 %v344, 0.0
    %v672 = vmax.f32 %v346, 0.0
    %v673 = vmax.f32 %v537, 0.0
    %v674 = vmax.f32 %v539, 0.0
    %v675 = vmax.f32 %v348, 0.0
    %v676 = vmax.f32 %v350, 0.0
    %v677 = vmax.f32 %v541, 0.0
    %v678 = vmax.f32 %v543, 0.0
    %v679 = vmax.f32 %v354, 0.0
    %v680 = vmax.f32 %v356, 0.0
    %v681 = vmax.f32 %v547, 0.0
    %v682 = vmax.f32 %v549, 0.0
    %v683 = vmax.f32 %v358, 0.0
    %v684 = vmax.f32 %v360, 0.0
    %v685 = vmax.f32 %v551, 0.0
    %v686 = vmax.f32 %v553, 0.0
    %v687 = vmax.f32 %v364, 0.0
    %v688 = vmax.f32 %v366, 0.0
    %v689 = vmax.f32 %v557, 0.0
    %v690 = vmax.f32 %v559, 0.0
    %v691 = vmax.f32 %v368, 0.0
    %v692 = vmax.f32 %v370, 0.0
    %v693 = vmax.f32 %v561, 0.0
    %v694 = vmax.f32 %v563, 0.0
    %v695 = vmax.f32 %v374, 0.0
    %v696 = vmax.f32 %v376, 0.0
    %v697 = vmax.f32 %v567, 0.0
    %v698 = vmax.f32 %v569, 0.0
    %v699 = vmax.f32 %v378, 0.0
    %v700 = vmax.f32 %v380, 0.0
    %v701 = vmax.f32 %v571, 0.0
    %v702 = vmax.f32 %v573, 0.0
    %v703 = vpack.c.bf16 %v579, %v575
    %v704 = vpack.c.bf16 %v580, %v576
    %v705 = vpack.c.bf16 %v581, %v577
    %v706 = vpack.c.bf16 %v582, %v578
    %v707 = vpack.c.bf16 %v587, %v583
    %v708 = vpack.c.bf16 %v588, %v584
    %v709 = vpack.c.bf16 %v589, %v585
    %v710 = vpack.c.bf16 %v590, %v586
    %v711 = vpack.c.bf16 %v595, %v591
    %v712 = vpack.c.bf16 %v596, %v592
    %v713 = vpack.c.bf16 %v597, %v593
    %v714 = vpack.c.bf16 %v598, %v594
    %v715 = vpack.c.bf16 %v603, %v599
    %v716 = vpack.c.bf16 %v604, %v600
    %v717 = vpack.c.bf16 %v605, %v601
    %v718 = vpack.c.bf16 %v606, %v602
    %v719 = vpack.c.bf16 %v611, %v607
    %v720 = vpack.c.bf16 %v612, %v608
    %v721 = vpack.c.bf16 %v613, %v609
    %v722 = vpack.c.bf16 %v614, %v610
    %v723 = vpack.c.bf16 %v619, %v615
    %v724 = vpack.c.bf16 %v620, %v616
    %v725 = vpack.c.bf16 %v621, %v617
    %v726 = vpack.c.bf16 %v622, %v618
    %v727 = vpack.c.bf16 %v627, %v623
    %v728 = vpack.c.bf16 %v628, %v624
    %v729 = vpack.c.bf16 %v629, %v625
    %v730 = vpack.c.bf16 %v630, %v626
    %v731 = vpack.c.bf16 %v635, %v631
    %v732 = vpack.c.bf16 %v636, %v632
    %v733 = vpack.c.bf16 %v637, %v633
    %v734 = vpack.c.bf16 %v638, %v634
    %v735 = vpack.c.bf16 %v643, %v639
    %v736 = vpack.c.bf16 %v644, %v640
    %v737 = vpack.c.bf16 %v645, %v641
    %v738 = vpack.c.bf16 %v646, %v642
    %v739 = vpack.c.bf16 %v651, %v647
    %v740 = vpack.c.bf16 %v652, %v648
    %v741 = vpack.c.bf16 %v653, %v649
    %v742 = vpack.c.bf16 %v654, %v650
    %v743 = vpack.c.bf16 %v659, %v655
    %v744 = vpack.c.bf16 %v660, %v656
    %v745 = vpack.c.bf16 %v661, %v657
    %v746 = vpack.c.bf16 %v662, %v658
    %v747 = vpack.c.bf16 %v667, %v663
    %v748 = vpack.c.bf16 %v668, %v664
    %v749 = vpack.c.bf16 %v669, %v665
    %v750 = vpack.c.bf16 %v670, %v666
    %v751 = vpack.c.bf16 %v675, %v671
    %v752 = vpack.c.bf16 %v676, %v672
    %v753 = vpack.c.bf16 %v677, %v673
    %v754 = vpack.c.bf16 %v678, %v674
    %v755 = vpack.c.bf16 %v683, %v679
    %v756 = vpack.c.bf16 %v684, %v680
    %v757 = vpack.c.bf16 %v685, %v681
    %v758 = vpack.c.bf16 %v686, %v682
    %v759 = vpack.c.bf16 %v691, %v687
    %v760 = vpack.c.bf16 %v692, %v688
    %v761 = vpack.c.bf16 %v693, %v689
    %v762 = vpack.c.bf16 %v694, %v690
    %v763 = vpack.c.bf16 %v699, %v695
    %v764 = vpack.c.bf16 %v700, %v696
    %v765 = vpack.c.bf16 %v701, %v697
    %v766 = vpack.c.bf16 %v702, %v698
    %v767 = vld [vmem:[%s3] sm:$0xf]
    %v768 = vld [vmem:[%s3 + $0x4] sm:$0xf]
    %v769 = vld [vmem:[%s3 + $0x8] sm:$0xf]
    %v770 = vld [vmem:[%s3 + $0xc] sm:$0xf]
    %v771 = vld [vmem:[%s3 + $0x10] sm:$0xf]
    %v772 = vld [vmem:[%s3 + $0x14] sm:$0xf]
    %v773 = vld [vmem:[%s3 + $0x18] sm:$0xf]
    %v774 = vld [vmem:[%s3 + $0x1c] sm:$0xf]
    %v775 = vld [vmem:[%s3 + $0x20] sm:$0xf]
    %v776 = vld [vmem:[%s3 + $0x24] sm:$0xf]
    %v777 = vld [vmem:[%s3 + $0x28] sm:$0xf]
    %v778 = vld [vmem:[%s3 + $0x2c] sm:$0xf]
    %v779 = vld [vmem:[%s3 + $0x30] sm:$0xf]
    %v780 = vld [vmem:[%s3 + $0x34] sm:$0xf]
    %v781 = vld [vmem:[%s3 + $0x38] sm:$0xf]
    %v782 = vld [vmem:[%s3 + $0x3c] sm:$0xf]
    %v783 = vld [vmem:[%s3 + $0x40] sm:$0xf]
    %v784 = vld [vmem:[%s3 + $0x44] sm:$0xf]
    %v785 = vld [vmem:[%s3 + $0x48] sm:$0xf]
    %v786 = vld [vmem:[%s3 + $0x4c] sm:$0xf]
    %v787 = vld [vmem:[%s3 + $0x50] sm:$0xf]
    %v788 = vld [vmem:[%s3 + $0x54] sm:$0xf]
    %v789 = vld [vmem:[%s3 + $0x58] sm:$0xf]
    %v790 = vld [vmem:[%s3 + $0x5c] sm:$0xf]
    %v791 = vld [vmem:[%s3 + $0x60] sm:$0xf]
    %v792 = vld [vmem:[%s3 + $0x64] sm:$0xf]
    %v793 = vld [vmem:[%s3 + $0x68] sm:$0xf]
    %v794 = vld [vmem:[%s3 + $0x6c] sm:$0xf]
    %v795 = vld [vmem:[%s3 + $0x70] sm:$0xf]
    %v796 = vld [vmem:[%s3 + $0x74] sm:$0xf]
    %v797 = vld [vmem:[%s3 + $0x78] sm:$0xf]
    %v798 = vld [vmem:[%s3 + $0x7c] sm:$0xf]
    %v799 = vld [vmem:[%s3 + $0x80] sm:$0xf]
    %v800 = vld [vmem:[%s3 + $0x84] sm:$0xf]
    %v801 = vld [vmem:[%s3 + $0x88] sm:$0xf]
    %v802 = vld [vmem:[%s3 + $0x8c] sm:$0xf]
    %v803 = vld [vmem:[%s3 + $0x90] sm:$0xf]
    %v804 = vld [vmem:[%s3 + $0x94] sm:$0xf]
    %v805 = vld [vmem:[%s3 + $0x98] sm:$0xf]
    %v806 = vld [vmem:[%s3 + $0x9c] sm:$0xf]
    %v807 = vld [vmem:[%s3 + $0xa0] sm:$0xf]
    %v808 = vld [vmem:[%s3 + $0xa4] sm:$0xf]
    %v809 = vld [vmem:[%s3 + $0xa8] sm:$0xf]
    %v810 = vld [vmem:[%s3 + $0xac] sm:$0xf]
    %v811 = vld [vmem:[%s3 + $0xb0] sm:$0xf]
    %v812 = vld [vmem:[%s3 + $0xb4] sm:$0xf]
    %v813 = vld [vmem:[%s3 + $0xb8] sm:$0xf]
    %v814 = vld [vmem:[%s3 + $0xbc] sm:$0xf]
    %v815 = vld [vmem:[%s3 + $0xc0] sm:$0xf]
    %v816 = vld [vmem:[%s3 + $0xc4] sm:$0xf]
    %v817 = vld [vmem:[%s3 + $0xc8] sm:$0xf]
    %v818 = vld [vmem:[%s3 + $0xcc] sm:$0xf]
    %v819 = vld [vmem:[%s3 + $0xd0] sm:$0xf]
    %v820 = vld [vmem:[%s3 + $0xd4] sm:$0xf]
    %v821 = vld [vmem:[%s3 + $0xd8] sm:$0xf]
    %v822 = vld [vmem:[%s3 + $0xdc] sm:$0xf]
    %v823 = vld [vmem:[%s3 + $0xe0] sm:$0xf]
    %v824 = vld [vmem:[%s3 + $0xe4] sm:$0xf]
    %v825 = vld [vmem:[%s3 + $0xe8] sm:$0xf]
    %v826 = vld [vmem:[%s3 + $0xec] sm:$0xf]
    %v827 = vld [vmem:[%s3 + $0xf0] sm:$0xf]
    %v828 = vld [vmem:[%s3 + $0xf4] sm:$0xf]
    %v829 = vld [vmem:[%s3 + $0xf8] sm:$0xf]
    %v830 = vld [vmem:[%s3 + $0xfc] sm:$0xf]
    %v831 = vld [vmem:[%s4] sm:$0x1]
    %v833 = vlaneseq
    %v834 = vshrl.u32 %v833, 7
    %v835 = vsub.s32 0, %v834
    %v836 = vrot.slane %v831, %v835
    %v902 = vunpack.c.l.b16 %v767
    %v903 = vunpack.c.l.b16 %v768
    %v904 = vunpack.c.l.b16 %v769
    %v905 = vunpack.c.l.b16 %v770
    %v906 = vunpack.c.l.b16 %v771
    %v907 = vunpack.c.l.b16 %v772
    %v908 = vunpack.c.l.b16 %v773
    %v909 = vunpack.c.l.b16 %v774
    %v910 = vunpack.c.l.b16 %v775
    %v911 = vunpack.c.l.b16 %v776
    %v912 = vunpack.c.l.b16 %v777
    %v913 = vunpack.c.l.b16 %v778
    %v914 = vunpack.c.l.b16 %v779
    %v915 = vunpack.c.l.b16 %v780
    %v916 = vunpack.c.l.b16 %v781
    %v917 = vunpack.c.l.b16 %v782
    %v918 = vunpack.c.l.b16 %v783
    %v919 = vunpack.c.l.b16 %v784
    %v920 = vunpack.c.l.b16 %v785
    %v921 = vunpack.c.l.b16 %v786
    %v922 = vunpack.c.l.b16 %v787
    %v923 = vunpack.c.l.b16 %v788
    %v924 = vunpack.c.l.b16 %v789
    %v925 = vunpack.c.l.b16 %v790
    %v926 = vunpack.c.l.b16 %v791
    %v927 = vunpack.c.l.b16 %v792
    %v928 = vunpack.c.l.b16 %v793
    %v929 = vunpack.c.l.b16 %v794
    %v930 = vunpack.c.l.b16 %v795
    %v931 = vunpack.c.l.b16 %v796
    %v932 = vunpack.c.l.b16 %v797
    %v933 = vunpack.c.l.b16 %v798
    %v934 = vunpack.c.l.b16 %v799
    %v935 = vunpack.c.l.b16 %v800
    %v936 = vunpack.c.l.b16 %v801
    %v937 = vunpack.c.l.b16 %v802
    %v938 = vunpack.c.l.b16 %v803
    %v939 = vunpack.c.l.b16 %v804
    %v940 = vunpack.c.l.b16 %v805
    %v941 = vunpack.c.l.b16 %v806
    %v942 = vunpack.c.l.b16 %v807
    %v943 = vunpack.c.l.b16 %v808
    %v944 = vunpack.c.l.b16 %v809
    %v945 = vunpack.c.l.b16 %v810
    %v946 = vunpack.c.l.b16 %v811
    %v947 = vunpack.c.l.b16 %v812
    %v948 = vunpack.c.l.b16 %v813
    %v949 = vunpack.c.l.b16 %v814
    %v950 = vunpack.c.l.b16 %v815
    %v951 = vunpack.c.l.b16 %v816
    %v952 = vunpack.c.l.b16 %v817
    %v953 = vunpack.c.l.b16 %v818
    %v954 = vunpack.c.l.b16 %v819
    %v955 = vunpack.c.l.b16 %v820
    %v956 = vunpack.c.l.b16 %v821
    %v957 = vunpack.c.l.b16 %v822
    %v958 = vunpack.c.l.b16 %v823
    %v959 = vunpack.c.l.b16 %v824
    %v960 = vunpack.c.l.b16 %v825
    %v961 = vunpack.c.l.b16 %v826
    %v962 = vunpack.c.l.b16 %v827
    %v963 = vunpack.c.l.b16 %v828
    %v964 = vunpack.c.l.b16 %v829
    %v965 = vunpack.c.l.b16 %v830
    %v966 = vpack.c.b16 %v903, %v902
    %v967 = vpack.c.b16 %v905, %v904
    %v968 = vpack.c.b16 %v907, %v906
    %v969 = vpack.c.b16 %v909, %v908
    %v970 = vpack.c.b16 %v911, %v910
    %v971 = vpack.c.b16 %v913, %v912
    %v972 = vpack.c.b16 %v915, %v914
    %v973 = vpack.c.b16 %v917, %v916
    %v974 = vpack.c.b16 %v919, %v918
    %v975 = vpack.c.b16 %v921, %v920
    %v976 = vpack.c.b16 %v923, %v922
    %v977 = vpack.c.b16 %v925, %v924
    %v978 = vpack.c.b16 %v927, %v926
    %v979 = vpack.c.b16 %v929, %v928
    %v980 = vpack.c.b16 %v931, %v930
    %v981 = vpack.c.b16 %v933, %v932
    %v982 = vpack.c.b16 %v935, %v934
    %v983 = vpack.c.b16 %v937, %v936
    %v984 = vpack.c.b16 %v939, %v938
    %v985 = vpack.c.b16 %v941, %v940
    %v986 = vpack.c.b16 %v943, %v942
    %v987 = vpack.c.b16 %v945, %v944
    %v988 = vpack.c.b16 %v947, %v946
    %v989 = vpack.c.b16 %v949, %v948
    %v990 = vpack.c.b16 %v951, %v950
    %v991 = vpack.c.b16 %v953, %v952
    %v992 = vpack.c.b16 %v955, %v954
    %v993 = vpack.c.b16 %v957, %v956
    %v994 = vpack.c.b16 %v959, %v958
    %v995 = vpack.c.b16 %v961, %v960
    %v996 = vpack.c.b16 %v963, %v962
    %v997 = vpack.c.b16 %v965, %v964
    %1030 = vmatprep.subr.bf16.mxu0 0
    %1031 = vmatpush1.bf16.msra.mxu0 %v966
    %1032 = vmatprep.subr.bf16.mxu0 0
    %1033 = vmatpush1.bf16.msra.mxu0 %v967
    %1034 = vmatprep.subr.bf16.mxu0 0
    %1035 = vmatpush1.bf16.msra.mxu0 %v968
    %1036 = vmatprep.subr.bf16.mxu0 0
    %1037 = vmatpush1.bf16.msra.mxu0 %v969
    %1038 = vmatprep.subr.bf16.mxu0 0
    %1039 = vmatpush1.bf16.msra.mxu0 %v970
    %1040 = vmatprep.subr.bf16.mxu0 0
    %1041 = vmatpush1.bf16.msra.mxu0 %v971
    %1042 = vmatprep.subr.bf16.mxu0 0
    %1043 = vmatpush1.bf16.msra.mxu0 %v972
    %1044 = vmatprep.subr.bf16.mxu0 0
    %1045 = vmatpush1.bf16.msra.mxu0 %v973
    %1046 = vmatprep.subr.bf16.mxu0 0
    %1047 = vmatpush1.bf16.msra.mxu0 %v974
    %1048 = vmatprep.subr.bf16.mxu0 0
    %1049 = vmatpush1.bf16.msra.mxu0 %v975
    %1050 = vmatprep.subr.bf16.mxu0 0
    %1051 = vmatpush1.bf16.msra.mxu0 %v976
    %1052 = vmatprep.subr.bf16.mxu0 0
    %1053 = vmatpush1.bf16.msra.mxu0 %v977
    %1054 = vmatprep.subr.bf16.mxu0 0
    %1055 = vmatpush1.bf16.msra.mxu0 %v978
    %1056 = vmatprep.subr.bf16.mxu0 0
    %1057 = vmatpush1.bf16.msra.mxu0 %v979
    %1058 = vmatprep.subr.bf16.mxu0 0
    %1059 = vmatpush1.bf16.msra.mxu0 %v980
    %1060 = vmatprep.subr.bf16.mxu0 0
    %1061 = vmatpush1.bf16.msra.mxu0 %v981
    %1062 = vmatprep.mubr.bf16.mxu0 %v704
    %1063 = vmatmul.mubr.bf16.gmra.mrb[0].mxu0 %v703
    %v1064 = vpop.f32.mrb[0].mxu0
    %v1065 = vadd.f32 %v836, %v1064
    %v1066 = vpop.f32.mrb[0].mxu0
    %v1067 = vpop.f32.mrb[0].mxu0
    %v1068 = vadd.f32 %v836, %v1067
    %v1069 = vpop.f32.mrb[0].mxu0
    %1070 = vmatprep.mubr.bf16.mxu0 %v708
    %1071 = vmatmul.mubr.bf16.gmra.mrb[0].mxu0 %v707
    %v1072 = vpop.f32.mrb[0].mxu0
    %v1073 = vadd.f32 %v836, %v1072
    %v1074 = vpop.f32.mrb[0].mxu0
    %v1075 = vpop.f32.mrb[0].mxu0
    %v1076 = vadd.f32 %v836, %v1075
    %v1077 = vpop.f32.mrb[0].mxu0
    %1078 = vmatprep.mubr.bf16.mxu0 %v712
    %1079 = vmatmul.mubr.bf16.gmra.mrb[0].mxu0 %v711
    %v1080 = vpop.f32.mrb[0].mxu0
    %v1081 = vadd.f32 %v836, %v1080
    %v1082 = vpop.f32.mrb[0].mxu0
    %v1083 = vpop.f32.mrb[0].mxu0
    %v1084 = vadd.f32 %v836, %v1083
    %v1085 = vpop.f32.mrb[0].mxu0
    %1086 = vmatprep.mubr.bf16.mxu0 %v716
    %1087 = vmatmul.mubr.bf16.gmra.mrb[0].mxu0 %v715
    %v1088 = vpop.f32.mrb[0].mxu0
    %v1089 = vadd.f32 %v836, %v1088
    %v1090 = vpop.f32.mrb[0].mxu0
    %v1091 = vpop.f32.mrb[0].mxu0
    %v1092 = vadd.f32 %v836, %v1091
    %v1093 = vpop.f32.mrb[0].mxu0
    %1094 = vmatprep.mubr.bf16.mxu0 %v720
    %1095 = vmatmul.mubr.bf16.gmra.mrb[0].mxu0 %v719
    %v1096 = vpop.f32.mrb[0].mxu0
    %v1097 = vadd.f32 %v836, %v1096
    %v1098 = vpop.f32.mrb[0].mxu0
    %v1099 = vpop.f32.mrb[0].mxu0
    %v1100 = vadd.f32 %v836, %v1099
    %v1101 = vpop.f32.mrb[0].mxu0
    %1102 = vmatprep.mubr.bf16.mxu0 %v724
    %1103 = vmatmul.mubr.bf16.gmra.mrb[0].mxu0 %v723
    %v1104 = vpop.f32.mrb[0].mxu0
    %v1105 = vadd.f32 %v836, %v1104
    %v1106 = vpop.f32.mrb[0].mxu0
    %v1107 = vpop.f32.mrb[0].mxu0
    %v1108 = vadd.f32 %v836, %v1107
    %v1109 = vpop.f32.mrb[0].mxu0
    %1110 = vmatprep.mubr.bf16.mxu0 %v728
    %1111 = vmatmul.mubr.bf16.gmra.mrb[0].mxu0 %v727
    %v1112 = vpop.f32.mrb[0].mxu0
    %v1113 = vadd.f32 %v836, %v1112
    %v1114 = vpop.f32.mrb[0].mxu0
    %v1115 = vpop.f32.mrb[0].mxu0
    %v1116 = vadd.f32 %v836, %v1115
    %v1117 = vpop.f32.mrb[0].mxu0
    %1118 = vmatprep.mubr.bf16.mxu0 %v732
    %1119 = vmatmul.mubr.bf16.gmra.mrb[0].mxu0 %v731
    %v1120 = vpop.f32.mrb[0].mxu0
    %v1121 = vadd.f32 %v836, %v1120
    %v1122 = vpop.f32.mrb[0].mxu0
    %v1123 = vpop.f32.mrb[0].mxu0
    %v1124 = vadd.f32 %v836, %v1123
    %v1125 = vpop.f32.mrb[0].mxu0
    %1126 = vmatprep.mubr.bf16.mxu0 %v736
    %1127 = vmatmul.mubr.bf16.gmra.mrb[0].mxu0 %v735
    %v1128 = vpop.f32.mrb[0].mxu0
    %v1129 = vadd.f32 %v836, %v1128
    %v1130 = vpop.f32.mrb[0].mxu0
    %v1131 = vpop.f32.mrb[0].mxu0
    %v1132 = vadd.f32 %v836, %v1131
    %v1133 = vpop.f32.mrb[0].mxu0
    %1134 = vmatprep.mubr.bf16.mxu0 %v740
    %1135 = vmatmul.mubr.bf16.gmra.mrb[0].mxu0 %v739
    %v1136 = vpop.f32.mrb[0].mxu0
    %v1137 = vadd.f32 %v836, %v1136
    %v1138 = vpop.f32.mrb[0].mxu0
    %v1139 = vpop.f32.mrb[0].mxu0
    %v1140 = vadd.f32 %v836, %v1139
    %v1141 = vpop.f32.mrb[0].mxu0
    %1142 = vmatprep.mubr.bf16.mxu0 %v744
    %1143 = vmatmul.mubr.bf16.gmra.mrb[0].mxu0 %v743
    %v1144 = vpop.f32.mrb[0].mxu0
    %v1145 = vadd.f32 %v836, %v1144
    %v1146 = vpop.f32.mrb[0].mxu0
    %v1147 = vpop.f32.mrb[0].mxu0
    %v1148 = vadd.f32 %v836, %v1147
    %v1149 = vpop.f32.mrb[0].mxu0
    %1150 = vmatprep.mubr.bf16.mxu0 %v748
    %1151 = vmatmul.mubr.bf16.gmra.mrb[0].mxu0 %v747
    %v1152 = vpop.f32.mrb[0].mxu0
    %v1153 = vadd.f32 %v836, %v1152
    %v1154 = vpop.f32.mrb[0].mxu0
    %v1155 = vpop.f32.mrb[0].mxu0
    %v1156 = vadd.f32 %v836, %v1155
    %v1157 = vpop.f32.mrb[0].mxu0
    %1158 = vmatprep.mubr.bf16.mxu0 %v752
    %1159 = vmatmul.mubr.bf16.gmra.mrb[0].mxu0 %v751
    %v1160 = vpop.f32.mrb[0].mxu0
    %v1161 = vadd.f32 %v836, %v1160
    %v1162 = vpop.f32.mrb[0].mxu0
    %v1163 = vpop.f32.mrb[0].mxu0
    %v1164 = vadd.f32 %v836, %v1163
    %v1165 = vpop.f32.mrb[0].mxu0
    %1166 = vmatprep.mubr.bf16.mxu0 %v756
    %1167 = vmatmul.mubr.bf16.gmra.mrb[0].mxu0 %v755
    %v1168 = vpop.f32.mrb[0].mxu0
    %v1169 = vadd.f32 %v836, %v1168
    %v1170 = vpop.f32.mrb[0].mxu0
    %v1171 = vpop.f32.mrb[0].mxu0
    %v1172 = vadd.f32 %v836, %v1171
    %v1173 = vpop.f32.mrb[0].mxu0
    %1174 = vmatprep.mubr.bf16.mxu0 %v760
    %1175 = vmatmul.mubr.bf16.gmra.mrb[0].mxu0 %v759
    %v1176 = vpop.f32.mrb[0].mxu0
    %v1177 = vadd.f32 %v836, %v1176
    %v1178 = vpop.f32.mrb[0].mxu0
    %v1179 = vpop.f32.mrb[0].mxu0
    %v1180 = vadd.f32 %v836, %v1179
    %v1181 = vpop.f32.mrb[0].mxu0
    %1182 = vmatprep.mubr.bf16.mxu0 %v764
    %1183 = vmatmul.mubr.bf16.gmra.mrb[0].mxu0 %v763
    %v1184 = vpop.f32.mrb[0].mxu0
    %v1185 = vadd.f32 %v836, %v1184
    %v1186 = vpop.f32.mrb[0].mxu0
    %v1187 = vpop.f32.mrb[0].mxu0
    %v1188 = vadd.f32 %v836, %v1187
    %v1189 = vpop.f32.mrb[0].mxu0
    %1190 = vdwg.mxu0
    %1191 = vmatprep.subr.bf16.mxu0 0
    %1192 = vmatpush1.bf16.msra.mxu0 %v982
    %1193 = vmatprep.subr.bf16.mxu0 0
    %1194 = vmatpush1.bf16.msra.mxu0 %v983
    %1195 = vmatprep.subr.bf16.mxu0 0
    %1196 = vmatpush1.bf16.msra.mxu0 %v984
    %1197 = vmatprep.subr.bf16.mxu0 0
    %1198 = vmatpush1.bf16.msra.mxu0 %v985
    %1199 = vmatprep.subr.bf16.mxu0 0
    %1200 = vmatpush1.bf16.msra.mxu0 %v986
    %1201 = vmatprep.subr.bf16.mxu0 0
    %1202 = vmatpush1.bf16.msra.mxu0 %v987
    %1203 = vmatprep.subr.bf16.mxu0 0
    %1204 = vmatpush1.bf16.msra.mxu0 %v988
    %1205 = vmatprep.subr.bf16.mxu0 0
    %1206 = vmatpush1.bf16.msra.mxu0 %v989
    %1207 = vmatprep.subr.bf16.mxu0 0
    %1208 = vmatpush1.bf16.msra.mxu0 %v990
    %1209 = vmatprep.subr.bf16.mxu0 0
    %1210 = vmatpush1.bf16.msra.mxu0 %v991
    %1211 = vmatprep.subr.bf16.mxu0 0
    %1212 = vmatpush1.bf16.msra.mxu0 %v992
    %1213 = vmatprep.subr.bf16.mxu0 0
    %1214 = vmatpush1.bf16.msra.mxu0 %v993
    %1215 = vmatprep.subr.bf16.mxu0 0
    %1216 = vmatpush1.bf16.msra.mxu0 %v994
    %1217 = vmatprep.subr.bf16.mxu0 0
    %1218 = vmatpush1.bf16.msra.mxu0 %v995
    %1219 = vmatprep.subr.bf16.mxu0 0
    %1220 = vmatpush1.bf16.msra.mxu0 %v996
    %1221 = vmatprep.subr.bf16.mxu0 0
    %1222 = vmatpush1.bf16.msra.mxu0 %v997
    %1223 = vmatprep.mubr.bf16.mxu0 %v706
    %1224 = vmatmul.mubr.bf16.gmra.mrb[0].mxu0 %v705
    %v1225 = vpop.f32.mrb[0].mxu0
    %v1226 = vadd.f32 %v1065, %v1225
    %v1227 = vpop.f32.mrb[0].mxu0
    %v1228 = vpop.f32.mrb[0].mxu0
    %v1229 = vadd.f32 %v1068, %v1228
    %v1230 = vpop.f32.mrb[0].mxu0
    %1231 = vmatprep.mubr.bf16.mxu0 %v710
    %1232 = vmatmul.mubr.bf16.gmra.mrb[0].mxu0 %v709
    %v1233 = vpop.f32.mrb[0].mxu0
    %v1234 = vadd.f32 %v1073, %v1233
    %v1235 = vpop.f32.mrb[0].mxu0
    %v1236 = vpop.f32.mrb[0].mxu0
    %v1237 = vadd.f32 %v1076, %v1236
    %v1238 = vpop.f32.mrb[0].mxu0
    %1239 = vmatprep.mubr.bf16.mxu0 %v714
    %1240 = vmatmul.mubr.bf16.gmra.mrb[0].mxu0 %v713
    %v1241 = vpop.f32.mrb[0].mxu0
    %v1242 = vadd.f32 %v1081, %v1241
    %v1243 = vpop.f32.mrb[0].mxu0
    %v1244 = vpop.f32.mrb[0].mxu0
    %v1245 = vadd.f32 %v1084, %v1244
    %v1246 = vpop.f32.mrb[0].mxu0
    %1247 = vmatprep.mubr.bf16.mxu0 %v718
    %1248 = vmatmul.mubr.bf16.gmra.mrb[0].mxu0 %v717
    %v1249 = vpop.f32.mrb[0].mxu0
    %v1250 = vadd.f32 %v1089, %v1249
    %v1251 = vpop.f32.mrb[0].mxu0
    %v1252 = vpop.f32.mrb[0].mxu0
    %v1253 = vadd.f32 %v1092, %v1252
    %v1254 = vpop.f32.mrb[0].mxu0
    %1255 = vmatprep.mubr.bf16.mxu0 %v722
    %1256 = vmatmul.mubr.bf16.gmra.mrb[0].mxu0 %v721
    %v1257 = vpop.f32.mrb[0].mxu0
    %v1258 = vadd.f32 %v1097, %v1257
    %v1259 = vpop.f32.mrb[0].mxu0
    %v1260 = vpop.f32.mrb[0].mxu0
    %v1261 = vadd.f32 %v1100, %v1260
    %v1262 = vpop.f32.mrb[0].mxu0
    %1263 = vmatprep.mubr.bf16.mxu0 %v726
    %1264 = vmatmul.mubr.bf16.gmra.mrb[0].mxu0 %v725
    %v1265 = vpop.f32.mrb[0].mxu0
    %v1266 = vadd.f32 %v1105, %v1265
    %v1267 = vpop.f32.mrb[0].mxu0
    %v1268 = vpop.f32.mrb[0].mxu0
    %v1269 = vadd.f32 %v1108, %v1268
    %v1270 = vpop.f32.mrb[0].mxu0
    %1271 = vmatprep.mubr.bf16.mxu0 %v730
    %1272 = vmatmul.mubr.bf16.gmra.mrb[0].mxu0 %v729
    %v1273 = vpop.f32.mrb[0].mxu0
    %v1274 = vadd.f32 %v1113, %v1273
    %v1275 = vpop.f32.mrb[0].mxu0
    %v1276 = vpop.f32.mrb[0].mxu0
    %v1277 = vadd.f32 %v1116, %v1276
    %v1278 = vpop.f32.mrb[0].mxu0
    %1279 = vmatprep.mubr.bf16.mxu0 %v734
    %1280 = vmatmul.mubr.bf16.gmra.mrb[0].mxu0 %v733
    %v1281 = vpop.f32.mrb[0].mxu0
    %v1282 = vadd.f32 %v1121, %v1281
    %v1283 = vpop.f32.mrb[0].mxu0
    %v1284 = vpop.f32.mrb[0].mxu0
    %v1285 = vadd.f32 %v1124, %v1284
    %v1286 = vpop.f32.mrb[0].mxu0
    %1287 = vmatprep.mubr.bf16.mxu0 %v738
    %1288 = vmatmul.mubr.bf16.gmra.mrb[0].mxu0 %v737
    %v1289 = vpop.f32.mrb[0].mxu0
    %v1290 = vadd.f32 %v1129, %v1289
    %v1291 = vpop.f32.mrb[0].mxu0
    %v1292 = vpop.f32.mrb[0].mxu0
    %v1293 = vadd.f32 %v1132, %v1292
    %v1294 = vpop.f32.mrb[0].mxu0
    %1295 = vmatprep.mubr.bf16.mxu0 %v742
    %1296 = vmatmul.mubr.bf16.gmra.mrb[0].mxu0 %v741
    %v1297 = vpop.f32.mrb[0].mxu0
    %v1298 = vadd.f32 %v1137, %v1297
    %v1299 = vpop.f32.mrb[0].mxu0
    %v1300 = vpop.f32.mrb[0].mxu0
    %v1301 = vadd.f32 %v1140, %v1300
    %v1302 = vpop.f32.mrb[0].mxu0
    %1303 = vmatprep.mubr.bf16.mxu0 %v746
    %1304 = vmatmul.mubr.bf16.gmra.mrb[0].mxu0 %v745
    %v1305 = vpop.f32.mrb[0].mxu0
    %v1306 = vadd.f32 %v1145, %v1305
    %v1307 = vpop.f32.mrb[0].mxu0
    %v1308 = vpop.f32.mrb[0].mxu0
    %v1309 = vadd.f32 %v1148, %v1308
    %v1310 = vpop.f32.mrb[0].mxu0
    %1311 = vmatprep.mubr.bf16.mxu0 %v750
    %1312 = vmatmul.mubr.bf16.gmra.mrb[0].mxu0 %v749
    %v1313 = vpop.f32.mrb[0].mxu0
    %v1314 = vadd.f32 %v1153, %v1313
    %v1315 = vpop.f32.mrb[0].mxu0
    %v1316 = vpop.f32.mrb[0].mxu0
    %v1317 = vadd.f32 %v1156, %v1316
    %v1318 = vpop.f32.mrb[0].mxu0
    %1319 = vmatprep.mubr.bf16.mxu0 %v754
    %1320 = vmatmul.mubr.bf16.gmra.mrb[0].mxu0 %v753
    %v1321 = vpop.f32.mrb[0].mxu0
    %v1322 = vadd.f32 %v1161, %v1321
    %v1323 = vpop.f32.mrb[0].mxu0
    %v1324 = vpop.f32.mrb[0].mxu0
    %v1325 = vadd.f32 %v1164, %v1324
    %v1326 = vpop.f32.mrb[0].mxu0
    %1327 = vmatprep.mubr.bf16.mxu0 %v758
    %1328 = vmatmul.mubr.bf16.gmra.mrb[0].mxu0 %v757
    %v1329 = vpop.f32.mrb[0].mxu0
    %v1330 = vadd.f32 %v1169, %v1329
    %v1331 = vpop.f32.mrb[0].mxu0
    %v1332 = vpop.f32.mrb[0].mxu0
    %v1333 = vadd.f32 %v1172, %v1332
    %v1334 = vpop.f32.mrb[0].mxu0
    %1335 = vmatprep.mubr.bf16.mxu0 %v762
    %1336 = vmatmul.mubr.bf16.gmra.mrb[0].mxu0 %v761
    %v1337 = vpop.f32.mrb[0].mxu0
    %v1338 = vadd.f32 %v1177, %v1337
    %v1339 = vpop.f32.mrb[0].mxu0
    %v1340 = vpop.f32.mrb[0].mxu0
    %v1341 = vadd.f32 %v1180, %v1340
    %v1342 = vpop.f32.mrb[0].mxu0
    %1343 = vmatprep.mubr.bf16.mxu0 %v766
    %1344 = vmatmul.mubr.bf16.gmra.mrb[0].mxu0 %v765
    %v1345 = vpop.f32.mrb[0].mxu0
    %v1346 = vadd.f32 %v1185, %v1345
    %v1347 = vpop.f32.mrb[0].mxu0
    %v1348 = vpop.f32.mrb[0].mxu0
    %v1349 = vadd.f32 %v1188, %v1348
    %v1350 = vpop.f32.mrb[0].mxu0
    %1351 = vdwg.mxu0
    %v1352 = vmax.f32 %v1226, 0.0
    %v1353 = vmax.f32 %v1229, 0.0
    %v1354 = vmax.f32 %v1234, 0.0
    %v1355 = vmax.f32 %v1237, 0.0
    %v1356 = vmax.f32 %v1242, 0.0
    %v1357 = vmax.f32 %v1245, 0.0
    %v1358 = vmax.f32 %v1250, 0.0
    %v1359 = vmax.f32 %v1253, 0.0
    %v1360 = vmax.f32 %v1258, 0.0
    %v1361 = vmax.f32 %v1261, 0.0
    %v1362 = vmax.f32 %v1266, 0.0
    %v1363 = vmax.f32 %v1269, 0.0
    %v1364 = vmax.f32 %v1274, 0.0
    %v1365 = vmax.f32 %v1277, 0.0
    %v1366 = vmax.f32 %v1282, 0.0
    %v1367 = vmax.f32 %v1285, 0.0
    %v1368 = vmax.f32 %v1290, 0.0
    %v1369 = vmax.f32 %v1293, 0.0
    %v1370 = vmax.f32 %v1298, 0.0
    %v1371 = vmax.f32 %v1301, 0.0
    %v1372 = vmax.f32 %v1306, 0.0
    %v1373 = vmax.f32 %v1309, 0.0
    %v1374 = vmax.f32 %v1314, 0.0
    %v1375 = vmax.f32 %v1317, 0.0
    %v1376 = vmax.f32 %v1322, 0.0
    %v1377 = vmax.f32 %v1325, 0.0
    %v1378 = vmax.f32 %v1330, 0.0
    %v1379 = vmax.f32 %v1333, 0.0
    %v1380 = vmax.f32 %v1338, 0.0
    %v1381 = vmax.f32 %v1341, 0.0
    %v1382 = vmax.f32 %v1346, 0.0
    %v1383 = vmax.f32 %v1349, 0.0
    %1384 = vst [vmem:[#allocation2] sm:$0xff] %v1352
    %1385 = vst [vmem:[#allocation2 + $0x8] sm:$0xff] %v1353
    %1386 = vst [vmem:[#allocation2 + $0x10] sm:$0xff] %v1354
    %1387 = vst [vmem:[#allocation2 + $0x18] sm:$0xff] %v1355
    %1388 = vst [vmem:[#allocation2 + $0x20] sm:$0xff] %v1356
    %1389 = vst [vmem:[#allocation2 + $0x28] sm:$0xff] %v1357
    %1390 = vst [vmem:[#allocation2 + $0x30] sm:$0xff] %v1358
    %1391 = vst [vmem:[#allocation2 + $0x38] sm:$0xff] %v1359
    %1392 = vst [vmem:[#allocation2 + $0x40] sm:$0xff] %v1360
    %1393 = vst [vmem:[#allocation2 + $0x48] sm:$0xff] %v1361
    %1394 = vst [vmem:[#allocation2 + $0x50] sm:$0xff] %v1362
    %1395 = vst [vmem:[#allocation2 + $0x58] sm:$0xff] %v1363
    %1396 = vst [vmem:[#allocation2 + $0x60] sm:$0xff] %v1364
    %1397 = vst [vmem:[#allocation2 + $0x68] sm:$0xff] %v1365
    %1398 = vst [vmem:[#allocation2 + $0x70] sm:$0xff] %v1366
    %1399 = vst [vmem:[#allocation2 + $0x78] sm:$0xff] %v1367
    %1400 = vst [vmem:[#allocation2 + $0x80] sm:$0xff] %v1368
    %1401 = vst [vmem:[#allocation2 + $0x88] sm:$0xff] %v1369
    %1402 = vst [vmem:[#allocation2 + $0x90] sm:$0xff] %v1370
    %1403 = vst [vmem:[#allocation2 + $0x98] sm:$0xff] %v1371
    %1404 = vst [vmem:[#allocation2 + $0xa0] sm:$0xff] %v1372
    %1405 = vst [vmem:[#allocation2 + $0xa8] sm:$0xff] %v1373
    %1406 = vst [vmem:[#allocation2 + $0xb0] sm:$0xff] %v1374
    %1407 = vst [vmem:[#allocation2 + $0xb8] sm:$0xff] %v1375
    %1408 = vst [vmem:[#allocation2 + $0xc0] sm:$0xff] %v1376
    %1409 = vst [vmem:[#allocation2 + $0xc8] sm:$0xff] %v1377
    %1410 = vst [vmem:[#allocation2 + $0xd0] sm:$0xff] %v1378
    %1411 = vst [vmem:[#allocation2 + $0xd8] sm:$0xff] %v1379
    %1412 = vst [vmem:[#allocation2 + $0xe0] sm:$0xff] %v1380
    %1413 = vst [vmem:[#allocation2 + $0xe8] sm:$0xff] %v1381
    %1414 = vst [vmem:[#allocation2 + $0xf0] sm:$0xff] %v1382
    %1415 = vst [vmem:[#allocation2 + $0xf8] sm:$0xff] %v1383
    // Predicated region
    $region22: #{tpu_custom_call.1} parent=1 // pred_check
      _
    $region23: #{tpu_custom_call.1} parent=1 // pred_check_branch
      %1417 = sbr.rel (0) target = $region25
    $region24: #{tpu_custom_call.1} parent=1 // pred_region
      %s1419 = ssub.s32 4096, 4096
      %1420 = vsyncadd [#allocation3], %s1419
      %s1421 = sshll.u32 [#allocation2], 4
      %s1422 = int_to_ptr.vmem [resolvable:$true] %s1421
      %1427 = dma.vmem_to_hbm [thread:$0]  %s1422, 4096, %s5, [#allocation3], 128, 128, 8
    $region25: #{tpu_custom_call.1} parent=1 // pred_fallthru
      _
    // Predicated region
    $region26: #{tpu_custom_call.1} parent=1 // pred_check
      _
    $region27: #{tpu_custom_call.1} parent=1 // pred_check_branch
      %1429 = sbr.rel (0) target = $region29
    $region28: #{tpu_custom_call.1} parent=1 // pred_region
      %1430 = dma.done [#allocation3], 4096
    $region29: #{tpu_custom_call.1} parent=1 // pred_fallthru
      _
    %1431 = vsyncpa [#allocation3], 1

// kernel: tpu_custom_call.1
$region0: #{tpu_custom_call.1}
  #allocation0 [shape = 'u32[]', space=smem, size = 0x4, offset = 0x4, fixed_abs, tag = 'smem constant byte address 0x4 - core index']
  #allocation1 [shape = 'u32[144,128]{1,0:T(1,128)}', space=vmem, size = 0x12000, scoped, tag = 'internal scratch']
  %s0 = inlined_call_operand.vmem [shape: f32[256,32], index: 0, kind: input, shape index: {}]
  %s1 = inlined_call_operand.vmem [shape: bf16[32,512], index: 1, kind: input, shape index: {}]
  %s2 = inlined_call_operand.vmem [shape: f32[1,512], index: 2, kind: input, shape index: {}]
  %s3 = inlined_call_operand.vmem [shape: bf16[512,128], index: 3, kind: input, shape index: {}]
  %s4 = inlined_call_operand.vmem [shape: f32[1,128], index: 4, kind: input, shape index: {}]
  %s5 = inlined_call_operand.hbm [shape: f32[256,128], index: 5, kind: output, shape index: {}]
  %s6 = sld [smem:[#allocation0]]
  $region30: #{tpu_custom_call.1} parent=0
    _
  %s8 = ssub.s32 1, %s6
  %s9 = scalar_select 0, %s8, %s6
  $region1: #{tpu_custom_call.1} parent=0
    #allocation2 [shape = 'u8[131072]{0}', space=vmem, size = 0x20000, scoped, tag = 'output window, operand 0, single buffered']
    #allocation3 [shape = 's32[1]{0}', space=sflag, size = 0x4, scoped, tag = 'scoped memory for tpu_custom_call.1']
    %10 = vsyncpa [#allocation3], 0
    // Predicated region
    $region2: #{tpu_custom_call.1} parent=1 // pred_check
      _
    $region3: #{tpu_custom_call.1} parent=1 // pred_check_branch
      %12 = sbr.rel (0) target = $region5
    $region4: #{tpu_custom_call.1} parent=1 // pred_region
      _
    $region5: #{tpu_custom_call.1} parent=1 // pred_fallthru
      _
    // Predicated region
    $region6: #{tpu_custom_call.1} parent=1 // pred_check
      _
    $region7: #{tpu_custom_call.1} parent=1 // pred_check_branch
      %14 = sbr.rel (0) target = $region9
    $region8: #{tpu_custom_call.1} parent=1 // pred_region
      _
    $region9: #{tpu_custom_call.1} parent=1 // pred_fallthru
      _
    // Predicated region
    $region10: #{tpu_custom_call.1} parent=1 // pred_check
      _
    $region11: #{tpu_custom_call.1} parent=1 // pred_check_branch
      %16 = sbr.rel (0) target = $region13
    $region12: #{tpu_custom_call.1} parent=1 // pred_region
      _
    $region13: #{tpu_custom_call.1} parent=1 // pred_fallthru
      _
    // Predicated region
    $region14: #{tpu_custom_call.1} parent=1 // pred_check
      _
    $region15: #{tpu_custom_call.1} parent=1 // pred_check_branch
      %18 = sbr.rel (0) target = $region17
    $region16: #{tpu_custom_call.1} parent=1 // pred_region
      _
    $region17: #{tpu_custom_call.1} parent=1 // pred_fallthru
      _
    // Predicated region
    $region18: #{tpu_custom_call.1} parent=1 // pred_check
      _
    $region19: #{tpu_custom_call.1} parent=1 // pred_check_branch
      %20 = sbr.rel (0) target = $region21
    $region20: #{tpu_custom_call.1} parent=1 // pred_region
      _
    $region21: #{tpu_custom_call.1} parent=1 // pred_fallthru
      _
    %v22 = vld [vmem:[%s0] sm:$0xff]
    %v23 = vld [vmem:[%s0 + $0x8] sm:$0xff]
    %v24 = vld [vmem:[%s0 + $0x10] sm:$0xff]
    %v25 = vld [vmem:[%s0 + $0x18] sm:$0xff]
    %v26 = vld [vmem:[%s0 + $0x20] sm:$0xff]
    %v27 = vld [vmem:[%s0 + $0x28] sm:$0xff]
    %v28 = vld [vmem:[%s0 + $0x30] sm:$0xff]
    %v29 = vld [vmem:[%s0 + $0x38] sm:$0xff]
    %v30 = vld [vmem:[%s0 + $0x40] sm:$0xff]
    %v31 = vld [vmem:[%s0 + $0x48] sm:$0xff]
    %v32 = vld [vmem:[%s0 + $0x50] sm:$0xff]
    %v33 = vld [vmem:[%s0 + $0x58] sm:$0xff]
    %v34 = vld [vmem:[%s0 + $0x60] sm:$0xff]
    %v35 = vld [vmem:[%s0 + $0x68] sm:$0xff]
    %v36 = vld [vmem:[%s0 + $0x70] sm:$0xff]
    %v37 = vld [vmem:[%s0 + $0x78] sm:$0xff]
    %v38 = vld [vmem:[%s0 + $0x80] sm:$0xff]
    %v39 = vld [vmem:[%s0 + $0x88] sm:$0xff]
    %v40 = vld [vmem:[%s0 + $0x90] sm:$0xff]
    %v41 = vld [vmem:[%s0 + $0x98] sm:$0xff]
    %v42 = vld [vmem:[%s0 + $0xa0] sm:$0xff]
    %v43 = vld [vmem:[%s0 + $0xa8] sm:$0xff]
    %v44 = vld [vmem:[%s0 + $0xb0] sm:$0xff]
    %v45 = vld [vmem:[%s0 + $0xb8] sm:$0xff]
    %v46 = vld [vmem:[%s0 + $0xc0] sm:$0xff]
    %v47 = vld [vmem:[%s0 + $0xc8] sm:$0xff]
    %v48 = vld [vmem:[%s0 + $0xd0] sm:$0xff]
    %v49 = vld [vmem:[%s0 + $0xd8] sm:$0xff]
    %v50 = vld [vmem:[%s0 + $0xe0] sm:$0xff]
    %v51 = vld [vmem:[%s0 + $0xe8] sm:$0xff]
    %v52 = vld [vmem:[%s0 + $0xf0] sm:$0xff]
    %v53 = vld [vmem:[%s0 + $0xf8] sm:$0xff]
    %v54 = vpack.c.bf16 %v23, %v22
    %v55 = vpack.c.bf16 %v25, %v24
    %v56 = vpack.c.bf16 %v27, %v26
    %v57 = vpack.c.bf16 %v29, %v28
    %v58 = vpack.c.bf16 %v31, %v30
    %v59 = vpack.c.bf16 %v33, %v32
    %v60 = vpack.c.bf16 %v35, %v34
    %v61 = vpack.c.bf16 %v37, %v36
    %v62 = vpack.c.bf16 %v39, %v38
    %v63 = vpack.c.bf16 %v41, %v40
    %v64 = vpack.c.bf16 %v43, %v42
    %v65 = vpack.c.bf16 %v45, %v44
    %v66 = vpack.c.bf16 %v47, %v46
    %v67 = vpack.c.bf16 %v49, %v48
    %v68 = vpack.c.bf16 %v51, %v50
    %v69 = vpack.c.bf16 %v53, %v52
    %v70 = vld [vmem:[%s1] sm:$0xff]
    %v71 = vld [vmem:[%s1 + $0x8] sm:$0xff]
    %v72 = vld [vmem:[%s1 + $0x10] sm:$0xff]
    %v73 = vld [vmem:[%s1 + $0x18] sm:$0xff]
    %v74 = vld [vmem:[%s1 + $0x20] sm:$0xff]
    %v75 = vld [vmem:[%s1 + $0x28] sm:$0xff]
    %v76 = vld [vmem:[%s1 + $0x30] sm:$0xff]
    %v77 = vld [vmem:[%s1 + $0x38] sm:$0xff]
    %v78 = vld [vmem:[%s2] sm:$0xf]
    %v80 = vlaneseq
    %v81 = vshrl.u32 %v80, 7
    %v82 = vsub.s32 0, %v81
    %v83 = vrot.slane %v78, %v82
    %v84 = vlaneseq
    %v85 = vshrl.u32 %v84, 7
    %v86 = vsub.s32 1, %v85
    %v87 = vrot.slane %v78, %v86
    %v88 = vlaneseq
    %v89 = vshrl.u32 %v88, 7
    %v90 = vsub.s32 2, %v89
    %v91 = vrot.slane %v78, %v90
    %v92 = vlaneseq
    %v93 = vshrl.u32 %v92, 7
    %v94 = vsub.s32 3, %v93
    %v95 = vrot.slane %v78, %v94
    %v108 = vunpack.c.l.b16 %v70
    %v109 = vunpack.c.h.b16 %v70
    %v110 = vunpack.c.l.b16 %v71
    %v111 = vunpack.c.h.b16 %v71
    %v112 = vunpack.c.l.b16 %v72
    %v113 = vunpack.c.h.b16 %v72
    %v114 = vunpack.c.l.b16 %v73
    %v115 = vunpack.c.h.b16 %v73
    %v116 = vunpack.c.l.b16 %v74
    %v117 = vunpack.c.h.b16 %v74
    %v118 = vunpack.c.l.b16 %v75
    %v119 = vunpack.c.h.b16 %v75
    %v120 = vunpack.c.l.b16 %v76
    %v121 = vunpack.c.h.b16 %v76
    %v122 = vunpack.c.l.b16 %v77
    %v123 = vunpack.c.h.b16 %v77
    %v124 = vpack.c.b16 %v112, %v108
    %v125 = vpack.c.b16 %v113, %v109
    %v126 = vpack.c.b16 %v114, %v110
    %v127 = vpack.c.b16 %v115, %v111
    %v128 = vpack.c.b16 %v120, %v116
    %v129 = vpack.c.b16 %v121, %v117
    %v130 = vpack.c.b16 %v122, %v118
    %v131 = vpack.c.b16 %v123, %v119
    %vm140 = vcmask 261120
    %v142 = vsel %vm140, %v54, 0
    %v145 = vsel %vm140, %v55, 0
    %v148 = vsel %vm140, %v56, 0
    %v151 = vsel %vm140, %v57, 0
    %v154 = vsel %vm140, %v58, 0
    %v157 = vsel %vm140, %v59, 0
    %v160 = vsel %vm140, %v60, 0
    %v163 = vsel %vm140, %v61, 0
    %v166 = vsel %vm140, %v62, 0
    %v169 = vsel %vm140, %v63, 0
    %v172 = vsel %vm140, %v64, 0
    %v175 = vsel %vm140, %v65, 0
    %v178 = vsel %vm140, %v66, 0
    %v181 = vsel %vm140, %v67, 0
    %v184 = vsel %vm140, %v68, 0
    %v187 = vsel %vm140, %v69, 0
    %189 = vmatprep.subr.bf16.mxu0 %v125
    %190 = vmatpush1.bf16.msra.mxu0 %v124
    %191 = vmatprep.subr.bf16.mxu0 %v129
    %192 = vmatpush1.bf16.msra.mxu0 %v128
    %193 = vmatprep.subr.bf16.mxu0 0
    %194 = vmatpush1.bf16.msra.mxu0 0
    %195 = vmatprep.subr.bf16.mxu0 0
    %196 = vmatpush1.bf16.msra.mxu0 0
    %197 = vmatprep.subr.bf16.mxu0 0
    %198 = vmatpush1.bf16.msra.mxu0 0
    %199 = vmatprep.subr.bf16.mxu0 0
    %200 = vmatpush1.bf16.msra.mxu0 0
    %201 = vmatprep.subr.bf16.mxu0 0
    %202 = vmatpush1.bf16.msra.mxu0 0
    %203 = vmatprep.subr.bf16.mxu0 0
    %204 = vmatpush1.bf16.msra.mxu0 0
    %205 = vmatprep.subr.bf16.mxu0 0
    %206 = vmatpush1.bf16.msra.mxu0 0
    %207 = vmatprep.subr.bf16.mxu0 0
    %208 = vmatpush1.bf16.msra.mxu0 0
    %209 = vmatprep.subr.bf16.mxu0 0
    %210 = vmatpush1.bf16.msra.mxu0 0
    %211 = vmatprep.subr.bf16.mxu0 0
    %212 = vmatpush1.bf16.msra.mxu0 0
    %213 = vmatprep.subr.bf16.mxu0 0
    %214 = vmatpush1.bf16.msra.mxu0 0
    %215 = vmatprep.subr.bf16.mxu0 0
    %216 = vmatpush1.bf16.msra.mxu0 0
    %217 = vmatprep.subr.bf16.mxu0 0
    %218 = vmatpush1.bf16.msra.mxu0 0
    %219 = vmatprep.subr.bf16.mxu0 0
    %220 = vmatpush1.bf16.msra.mxu0 0
    %221 = vmatprep.mubr.bf16.mxu0 0
    %222 = vmatmul.mubr.bf16.gmra.mrb[0].mxu0 %v142
    %v223 = vpop.f32.mrb[0].mxu0
    %v224 = vadd.f32 %v83, %v223
    %v225 = vpop.f32.mrb[0].mxu0
    %v226 = vadd.f32 %v87, %v225
    %v227 = vpop.f32.mrb[0].mxu0
    %v228 = vadd.f32 %v83, %v227
    %v229 = vpop.f32.mrb[0].mxu0
    %v230 = vadd.f32 %v87, %v229
    %231 = vmatprep.mubr.bf16.mxu0 0
    %232 = vmatmul.mubr.bf16.gmra.mrb[0].mxu0 %v145
    %v233 = vpop.f32.mrb[0].mxu0
    %v234 = vadd.f32 %v83, %v233
    %v235 = vpop.f32.mrb[0].mxu0
    %v236 = vadd.f32 %v87, %v235
    %v237 = vpop.f32.mrb[0].mxu0
    %v238 = vadd.f32 %v83, %v237
    %v239 = vpop.f32.mrb[0].mxu0
    %v240 = vadd.f32 %v87, %v239
    %241 = vmatprep.mubr.bf16.mxu0 0
    %242 = vmatmul.mubr.bf16.gmra.mrb[0].mxu0 %v148
    %v243 = vpop.f32.mrb[0].mxu0
    %v244 = vadd.f32 %v83, %v243
    %v245 = vpop.f32.mrb[0].mxu0
    %v246 = vadd.f32 %v87, %v245
    %v247 = vpop.f32.mrb[0].mxu0
    %v248 = vadd.f32 %v83, %v247
    %v249 = vpop.f32.mrb[0].mxu0
    %v250 = vadd.f32 %v87, %v249
    %251 = vmatprep.mubr.bf16.mxu0 0
    %252 = vmatmul.mubr.bf16.gmra.mrb[0].mxu0 %v151
    %v253 = vpop.f32.mrb[0].mxu0
    %v254 = vadd.f32 %v83, %v253
    %v255 = vpop.f32.mrb[0].mxu0
    %v256 = vadd.f32 %v87, %v255
    %v257 = vpop.f32.mrb[0].mxu0
    %v258 = vadd.f32 %v83, %v257
    %v259 = vpop.f32.mrb[0].mxu0
    %v260 = vadd.f32 %v87, %v259
    %261 = vmatprep.mubr.bf16.mxu0 0
    %262 = vmatmul.mubr.bf16.gmra.mrb[0].mxu0 %v154
    %v263 = vpop.f32.mrb[0].mxu0
    %v264 = vadd.f32 %v83, %v263
    %v265 = vpop.f32.mrb[0].mxu0
    %v266 = vadd.f32 %v87, %v265
    %v267 = vpop.f32.mrb[0].mxu0
    %v268 = vadd.f32 %v83, %v267
    %v269 = vpop.f32.mrb[0].mxu0
    %v270 = vadd.f32 %v87, %v269
    %271 = vmatprep.mubr.bf16.mxu0 0
    %272 = vmatmul.mubr.bf16.gmra.mrb[0].mxu0 %v157
    %v273 = vpop.f32.mrb[0].mxu0
    %v274 = vadd.f32 %v83, %v273
    %v275 = vpop.f32.mrb[0].mxu0
    %v276 = vadd.f32 %v87, %v275
    %v277 = vpop.f32.mrb[0].mxu0
    %v278 = vadd.f32 %v83, %v277
    %v279 = vpop.f32.mrb[0].mxu0
    %v280 = vadd.f32 %v87, %v279
    %281 = vmatprep.mubr.bf16.mxu0 0
    %282 = vmatmul.mubr.bf16.gmra.mrb[0].mxu0 %v160
    %v283 = vpop.f32.mrb[0].mxu0
    %v284 = vadd.f32 %v83, %v283
    %v285 = vpop.f32.mrb[0].mxu0
    %v286 = vadd.f32 %v87, %v285
    %v287 = vpop.f32.mrb[0].mxu0
    %v288 = vadd.f32 %v83, %v287
    %v289 = vpop.f32.mrb[0].mxu0
    %v290 = vadd.f32 %v87, %v289
    %291 = vmatprep.mubr.bf16.mxu0 0
    %292 = vmatmul.mubr.bf16.gmra.mrb[0].mxu0 %v163
    %v293 = vpop.f32.mrb[0].mxu0
    %v294 = vadd.f32 %v83, %v293
    %v295 = vpop.f32.mrb[0].mxu0
    %v296 = vadd.f32 %v87, %v295
    %v297 = vpop.f32.mrb[0].mxu0
    %v298 = vadd.f32 %v83, %v297
    %v299 = vpop.f32.mrb[0].mxu0
    %v300 = vadd.f32 %v87, %v299
    %301 = vmatprep.mubr.bf16.mxu0 0
    %302 = vmatmul.mubr.bf16.gmra.mrb[0].mxu0 %v166
    %v303 = vpop.f32.mrb[0].mxu0
    %v304 = vadd.f32 %v83, %v303
    %v305 = vpop.f32.mrb[0].mxu0
    %v306 = vadd.f32 %v87, %v305
    %v307 = vpop.f32.mrb[0].mxu0
    %v308 = vadd.f32 %v83, %v307
    %v309 = vpop.f32.mrb[0].mxu0
    %v310 = vadd.f32 %v87, %v309
    %311 = vmatprep.mubr.bf16.mxu0 0
    %312 = vmatmul.mubr.bf16.gmra.mrb[0].mxu0 %v169
    %v313 = vpop.f32.mrb[0].mxu0
    %v314 = vadd.f32 %v83, %v313
    %v315 = vpop.f32.mrb[0].mxu0
    %v316 = vadd.f32 %v87, %v315
    %v317 = vpop.f32.mrb[0].mxu0
    %v318 = vadd.f32 %v83, %v317
    %v319 = vpop.f32.mrb[0].mxu0
    %v320 = vadd.f32 %v87, %v319
    %321 = vmatprep.mubr.bf16.mxu0 0
    %322 = vmatmul.mubr.bf16.gmra.mrb[0].mxu0 %v172
    %v323 = vpop.f32.mrb[0].mxu0
    %v324 = vadd.f32 %v83, %v323
    %v325 = vpop.f32.mrb[0].mxu0
    %v326 = vadd.f32 %v87, %v325
    %v327 = vpop.f32.mrb[0].mxu0
    %v328 = vadd.f32 %v83, %v327
    %v329 = vpop.f32.mrb[0].mxu0
    %v330 = vadd.f32 %v87, %v329
    %331 = vmatprep.mubr.bf16.mxu0 0
    %332 = vmatmul.mubr.bf16.gmra.mrb[0].mxu0 %v175
    %v333 = vpop.f32.mrb[0].mxu0
    %v334 = vadd.f32 %v83, %v333
    %v335 = vpop.f32.mrb[0].mxu0
    %v336 = vadd.f32 %v87, %v335
    %v337 = vpop.f32.mrb[0].mxu0
    %v338 = vadd.f32 %v83, %v337
    %v339 = vpop.f32.mrb[0].mxu0
    %v340 = vadd.f32 %v87, %v339
    %341 = vmatprep.mubr.bf16.mxu0 0
    %342 = vmatmul.mubr.bf16.gmra.mrb[0].mxu0 %v178
    %v343 = vpop.f32.mrb[0].mxu0
    %v344 = vadd.f32 %v83, %v343
    %v345 = vpop.f32.mrb[0].mxu0
    %v346 = vadd.f32 %v87, %v345
    %v347 = vpop.f32.mrb[0].mxu0
    %v348 = vadd.f32 %v83, %v347
    %v349 = vpop.f32.mrb[0].mxu0
    %v350 = vadd.f32 %v87, %v349
    %351 = vmatprep.mubr.bf16.mxu0 0
    %352 = vmatmul.mubr.bf16.gmra.mrb[0].mxu0 %v181
    %v353 = vpop.f32.mrb[0].mxu0
    %v354 = vadd.f32 %v83, %v353
    %v355 = vpop.f32.mrb[0].mxu0
    %v356 = vadd.f32 %v87, %v355
    %v357 = vpop.f32.mrb[0].mxu0
    %v358 = vadd.f32 %v83, %v357
    %v359 = vpop.f32.mrb[0].mxu0
    %v360 = vadd.f32 %v87, %v359
    %361 = vmatprep.mubr.bf16.mxu0 0
    %362 = vmatmul.mubr.bf16.gmra.mrb[0].mxu0 %v184
    %v363 = vpop.f32.mrb[0].mxu0
    %v364 = vadd.f32 %v83, %v363
    %v365 = vpop.f32.mrb[0].mxu0
    %v366 = vadd.f32 %v87, %v365
    %v367 = vpop.f32.mrb[0].mxu0
    %v368 = vadd.f32 %v83, %v367
    %v369 = vpop.f32.mrb[0].mxu0
    %v370 = vadd.f32 %v87, %v369
    %371 = vmatprep.mubr.bf16.mxu0 0
    %372 = vmatmul.mubr.bf16.gmra.mrb[0].mxu0 %v187
    %v373 = vpop.f32.mrb[0].mxu0
    %v374 = vadd.f32 %v83, %v373
    %v375 = vpop.f32.mrb[0].mxu0
    %v376 = vadd.f32 %v87, %v375
    %v377 = vpop.f32.mrb[0].mxu0
    %v378 = vadd.f32 %v83, %v377
    %v379 = vpop.f32.mrb[0].mxu0
    %v380 = vadd.f32 %v87, %v379
    %381 = vdwg.mxu0
    %382 = vmatprep.subr.bf16.mxu0 %v127
    %383 = vmatpush1.bf16.msra.mxu0 %v126
    %384 = vmatprep.subr.bf16.mxu0 %v131
    %385 = vmatpush1.bf16.msra.mxu0 %v130
    %386 = vmatprep.subr.bf16.mxu0 0
    %387 = vmatpush1.bf16.msra.mxu0 0
    %388 = vmatprep.subr.bf16.mxu0 0
    %389 = vmatpush1.bf16.msra.mxu0 0
    %390 = vmatprep.subr.bf16.mxu0 0
    %391 = vmatpush1.bf16.msra.mxu0 0
    %392 = vmatprep.subr.bf16.mxu0 0
    %393 = vmatpush1.bf16.msra.mxu0 0
    %394 = vmatprep.subr.bf16.mxu0 0
    %395 = vmatpush1.bf16.msra.mxu0 0
    %396 = vmatprep.subr.bf16.mxu0 0
    %397 = vmatpush1.bf16.msra.mxu0 0
    %398 = vmatprep.subr.bf16.mxu0 0
    %399 = vmatpush1.bf16.msra.mxu0 0
    %400 = vmatprep.subr.bf16.mxu0 0
    %401 = vmatpush1.bf16.msra.mxu0 0
    %402 = vmatprep.subr.bf16.mxu0 0
    %403 = vmatpush1.bf16.msra.mxu0 0
    %404 = vmatprep.subr.bf16.mxu0 0
    %405 = vmatpush1.bf16.msra.mxu0 0
    %406 = vmatprep.subr.bf16.mxu0 0
    %407 = vmatpush1.bf16.msra.mxu0 0
    %408 = vmatprep.subr.bf16.mxu0 0
    %409 = vmatpush1.bf16.msra.mxu0 0
    %410 = vmatprep.subr.bf16.mxu0 0
    %411 = vmatpush1.bf16.msra.mxu0 0
    %412 = vmatprep.subr.bf16.mxu0 0
    %413 = vmatpush1.bf16.msra.mxu0 0
    %414 = vmatprep.mubr.bf16.mxu0 0
    %415 = vmatmul.mubr.bf16.gmra.mrb[0].mxu0 %v142
    %v416 = vpop.f32.mrb[0].mxu0
    %v417 = vadd.f32 %v91, %v416
    %v418 = vpop.f32.mrb[0].mxu0
    %v419 = vadd.f32 %v95, %v418
    %v420 = vpop.f32.mrb[0].mxu0
    %v421 = vadd.f32 %v91, %v420
    %v422 = vpop.f32.mrb[0].mxu0
    %v423 = vadd.f32 %v95, %v422
    %424 = vmatprep.mubr.bf16.mxu0 0
    %425 = vmatmul.mubr.bf16.gmra.mrb[0].mxu0 %v145
    %v426 = vpop.f32.mrb[0].mxu0
    %v427 = vadd.f32 %v91, %v426
    %v428 = vpop.f32.mrb[0].mxu0
    %v429 = vadd.f32 %v95, %v428
    %v430 = vpop.f32.mrb[0].mxu0
    %v431 = vadd.f32 %v91, %v430
    %v432 = vpop.f32.mrb[0].mxu0
    %v433 = vadd.f32 %v95, %v432
    %434 = vmatprep.mubr.bf16.mxu0 0
    %435 = vmatmul.mubr.bf16.gmra.mrb[0].mxu0 %v148
    %v436 = vpop.f32.mrb[0].mxu0
    %v437 = vadd.f32 %v91, %v436
    %v438 = vpop.f32.mrb[0].mxu0
    %v439 = vadd.f32 %v95, %v438
    %v440 = vpop.f32.mrb[0].mxu0
    %v441 = vadd.f32 %v91, %v440
    %v442 = vpop.f32.mrb[0].mxu0
    %v443 = vadd.f32 %v95, %v442
    %444 = vmatprep.mubr.bf16.mxu0 0
    %445 = vmatmul.mubr.bf16.gmra.mrb[0].mxu0 %v151
    %v446 = vpop.f32.mrb[0].mxu0
    %v447 = vadd.f32 %v91, %v446
    %v448 = vpop.f32.mrb[0].mxu0
    %v449 = vadd.f32 %v95, %v448
    %v450 = vpop.f32.mrb[0].mxu0
    %v451 = vadd.f32 %v91, %v450
    %v452 = vpop.f32.mrb[0].mxu0
    %v453 = vadd.f32 %v95, %v452
    %454 = vmatprep.mubr.bf16.mxu0 0
    %455 = vmatmul.mubr.bf16.gmra.mrb[0].mxu0 %v154
    %v456 = vpop.f32.mrb[0].mxu0
    %v457 = vadd.f32 %v91, %v456
    %v458 = vpop.f32.mrb[0].mxu0
    %v459 = vadd.f32 %v95, %v458
    %v460 = vpop.f32.mrb[0].mxu0
    %v461 = vadd.f32 %v91, %v460
    %v462 = vpop.f32.mrb[0].mxu0
    %v463 = vadd.f32 %v95, %v462
    %464 = vmatprep.mubr.bf16.mxu0 0
    %465 = vmatmul.mubr.bf16.gmra.mrb[0].mxu0 %v157
    %v466 = vpop.f32.mrb[0].mxu0
    %v467 = vadd.f32 %v91, %v466
    %v468 = vpop.f32.mrb[0].mxu0
    %v469 = vadd.f32 %v95, %v468
    %v470 = vpop.f32.mrb[0].mxu0
    %v471 = vadd.f32 %v91, %v470
    %v472 = vpop.f32.mrb[0].mxu0
    %v473 = vadd.f32 %v95, %v472
    %474 = vmatprep.mubr.bf16.mxu0 0
    %475 = vmatmul.mubr.bf16.gmra.mrb[0].mxu0 %v160
    %v476 = vpop.f32.mrb[0].mxu0
    %v477 = vadd.f32 %v91, %v476
    %v478 = vpop.f32.mrb[0].mxu0
    %v479 = vadd.f32 %v95, %v478
    %v480 = vpop.f32.mrb[0].mxu0
    %v481 = vadd.f32 %v91, %v480
    %v482 = vpop.f32.mrb[0].mxu0
    %v483 = vadd.f32 %v95, %v482
    %484 = vmatprep.mubr.bf16.mxu0 0
    %485 = vmatmul.mubr.bf16.gmra.mrb[0].mxu0 %v163
    %v486 = vpop.f32.mrb[0].mxu0
    %v487 = vadd.f32 %v91, %v486
    %v488 = vpop.f32.mrb[0].mxu0
    %v489 = vadd.f32 %v95, %v488
    %v490 = vpop.f32.mrb[0].mxu0
    %v491 = vadd.f32 %v91, %v490
    %v492 = vpop.f32.mrb[0].mxu0
    %v493 = vadd.f32 %v95, %v492
    %494 = vmatprep.mubr.bf16.mxu0 0
    %495 = vmatmul.mubr.bf16.gmra.mrb[0].mxu0 %v166
    %v496 = vpop.f32.mrb[0].mxu0
    %v497 = vadd.f32 %v91, %v496
    %v498 = vpop.f32.mrb[0].mxu0
    %v499 = vadd.f32 %v95, %v498
    %v500 = vpop.f32.mrb[0].mxu0
    %v501 = vadd.f32 %v91, %v500
    %v502 = vpop.f32.mrb[0].mxu0
    %v503 = vadd.f32 %v95, %v502
    %504 = vmatprep.mubr.bf16.mxu0 0
    %505 = vmatmul.mubr.bf16.gmra.mrb[0].mxu0 %v169
    %v506 = vpop.f32.mrb[0].mxu0
    %v507 = vadd.f32 %v91, %v506
    %v508 = vpop.f32.mrb[0].mxu0
    %v509 = vadd.f32 %v95, %v508
    %v510 = vpop.f32.mrb[0].mxu0
    %v511 = vadd.f32 %v91, %v510
    %v512 = vpop.f32.mrb[0].mxu0
    %v513 = vadd.f32 %v95, %v512
    %514 = vmatprep.mubr.bf16.mxu0 0
    %515 = vmatmul.mubr.bf16.gmra.mrb[0].mxu0 %v172
    %v516 = vpop.f32.mrb[0].mxu0
    %v517 = vadd.f32 %v91, %v516
    %v518 = vpop.f32.mrb[0].mxu0
    %v519 = vadd.f32 %v95, %v518
    %v520 = vpop.f32.mrb[0].mxu0
    %v521 = vadd.f32 %v91, %v520
    %v522 = vpop.f32.mrb[0].mxu0
    %v523 = vadd.f32 %v95, %v522
    %524 = vmatprep.mubr.bf16.mxu0 0
    %525 = vmatmul.mubr.bf16.gmra.mrb[0].mxu0 %v175
    %v526 = vpop.f32.mrb[0].mxu0
    %v527 = vadd.f32 %v91, %v526
    %v528 = vpop.f32.mrb[0].mxu0
    %v529 = vadd.f32 %v95, %v528
    %v530 = vpop.f32.mrb[0].mxu0
    %v531 = vadd.f32 %v91, %v530
    %v532 = vpop.f32.mrb[0].mxu0
    %v533 = vadd.f32 %v95, %v532
    %534 = vmatprep.mubr.bf16.mxu0 0
    %535 = vmatmul.mubr.bf16.gmra.mrb[0].mxu0 %v178
    %v536 = vpop.f32.mrb[0].mxu0
    %v537 = vadd.f32 %v91, %v536
    %v538 = vpop.f32.mrb[0].mxu0
    %v539 = vadd.f32 %v95, %v538
    %v540 = vpop.f32.mrb[0].mxu0
    %v541 = vadd.f32 %v91, %v540
    %v542 = vpop.f32.mrb[0].mxu0
    %v543 = vadd.f32 %v95, %v542
    %544 = vmatprep.mubr.bf16.mxu0 0
    %545 = vmatmul.mubr.bf16.gmra.mrb[0].mxu0 %v181
    %v546 = vpop.f32.mrb[0].mxu0
    %v547 = vadd.f32 %v91, %v546
    %v548 = vpop.f32.mrb[0].mxu0
    %v549 = vadd.f32 %v95, %v548
    %v550 = vpop.f32.mrb[0].mxu0
    %v551 = vadd.f32 %v91, %v550
    %v552 = vpop.f32.mrb[0].mxu0
    %v553 = vadd.f32 %v95, %v552
    %554 = vmatprep.mubr.bf16.mxu0 0
    %555 = vmatmul.mubr.bf16.gmra.mrb[0].mxu0 %v184
    %v556 = vpop.f32.mrb[0].mxu0
    %v557 = vadd.f32 %v91, %v556
    %v558 = vpop.f32.mrb[0].mxu0
    %v559 = vadd.f32 %v95, %v558
    %v560 = vpop.f32.mrb[0].mxu0
    %v561 = vadd.f32 %v91, %v560
    %v562 = vpop.f32.mrb[0].mxu0
    %v563 = vadd.f32 %v95, %v562
    %564 = vmatprep.mubr.bf16.mxu0 0
    %565 = vmatmul.mubr.bf16.gmra.mrb[0].mxu0 %v187
    %v566 = vpop.f32.mrb[0].mxu0
    %v567 = vadd.f32 %v91, %v566
    %v568 = vpop.f32.mrb[0].mxu0
    %v569 = vadd.f32 %v95, %v568
    %v570 = vpop.f32.mrb[0].mxu0
    %v571 = vadd.f32 %v91, %v570
    %v572 = vpop.f32.mrb[0].mxu0
    %v573 = vadd.f32 %v95, %v572
    %574 = vdwg.mxu0
    %v575 = vmax.f32 %v224, 0.0
    %v576 = vmax.f32 %v226, 0.0
    %v577 = vmax.f32 %v417, 0.0
    %v578 = vmax.f32 %v419, 0.0
    %v579 = vmax.f32 %v228, 0.0
    %v580 = vmax.f32 %v230, 0.0
    %v581 = vmax.f32 %v421, 0.0
    %v582 = vmax.f32 %v423, 0.0
    %v583 = vmax.f32 %v234, 0.0
    %v584 = vmax.f32 %v236, 0.0
    %v585 = vmax.f32 %v427, 0.0
    %v586 = vmax.f32 %v429, 0.0
    %v587 = vmax.f32 %v238, 0.0
    %v588 = vmax.f32 %v240, 0.0
    %v589 = vmax.f32 %v431, 0.0
    %v590 = vmax.f32 %v433, 0.0
    %v591 = vmax.f32 %v244, 0.0
    %v592 = vmax.f32 %v246, 0.0
    %v593 = vmax.f32 %v437, 0.0
    %v594 = vmax.f32 %v439, 0.0
    %v595 = vmax.f32 %v248, 0.0
    %v596 = vmax.f32 %v250, 0.0
    %v597 = vmax.f32 %v441, 0.0
    %v598 = vmax.f32 %v443, 0.0
    %v599 = vmax.f32 %v254, 0.0
    %v600 = vmax.f32 %v256, 0.0
    %v601 = vmax.f32 %v447, 0.0
    %v602 = vmax.f32 %v449, 0.0
    %v603 = vmax.f32 %v258, 0.0
    %v604 = vmax.f32 %v260, 0.0
    %v605 = vmax.f32 %v451, 0.0
    %v606 = vmax.f32 %v453, 0.0
    %v607 = vmax.f32 %v264, 0.0
    %v608 = vmax.f32 %v266, 0.0
    %v609 = vmax.f32 %v457, 0.0
    %v610 = vmax.f32 %v459, 0.0
    %v611 = vmax.f32 %v268, 0.0
    %v612 = vmax.f32 %v270, 0.0
    %v613 = vmax.f32 %v461, 0.0
    %v614 = vmax.f32 %v463, 0.0
    %v615 = vmax.f32 %v274, 0.0
    %v616 = vmax.f32 %v276, 0.0
    %v617 = vmax.f32 %v467, 0.0
    %v618 = vmax.f32 %v469, 0.0
    %v619 = vmax.f32 %v278, 0.0
    %v620 = vmax.f32 %v280, 0.0
    %v621 = vmax.f32 %v471, 0.0
    %v622 = vmax.f32 %v473, 0.0
    %v623 = vmax.f32 %v284, 0.0
    %v624 = vmax.f32 %v286, 0.0
    %v625 = vmax.f32 %v477, 0.0
    %v626 = vmax.f32 %v479, 0.0
    %v627 = vmax.f32 %v288, 0.0
    %v628 = vmax.f32 %v290, 0.0
    %v629 = vmax.f32 %v481, 0.0
    %v630 = vmax.f32 %v483, 0.0
    %v631 = vmax.f32 %v294, 0.0
    %v632 = vmax.f32 %v296, 0.0
    %v633 = vmax.f32 %v487, 0.0
    %v634 = vmax.f32 %v489, 0.0
    %v635 = vmax.f32 %v298, 0.0
    %v636 = vmax.f32 %v300, 0.0
    %v637 = vmax.f32 %v491, 0.0
    %v638 = vmax.f32 %v493, 0.0
    %v639 = vmax.f32 %v304, 0.0
    %v640 = vmax.f32 %v306, 0.0
    %v641 = vmax.f32 %v497, 0.0
    %v642 = vmax.f32 %v499, 0.0
    %v643 = vmax.f32 %v308, 0.0
    %v644 = vmax.f32 %v310, 0.0
    %v645 = vmax.f32 %v501, 0.0
    %v646 = vmax.f32 %v503, 0.0
    %v647 = vmax.f32 %v314, 0.0
    %v648 = vmax.f32 %v316, 0.0
    %v649 = vmax.f32 %v507, 0.0
    %v650 = vmax.f32 %v509, 0.0
    %v651 = vmax.f32 %v318, 0.0
    %v652 = vmax.f32 %v320, 0.0
    %v653 = vmax.f32 %v511, 0.0
    %v654 = vmax.f32 %v513, 0.0
    %v655 = vmax.f32 %v324, 0.0
    %v656 = vmax.f32 %v326, 0.0
    %v657 = vmax.f32 %v517, 0.0
    %v658 = vmax.f32 %v519, 0.0
    %v659 = vmax.f32 %v328, 0.0
    %v660 = vmax.f32 %v330, 0.0
    %v661 = vmax.f32 %v521, 0.0
    %v662 = vmax.f32 %v523, 0.0
    %v663 = vmax.f32 %v334, 0.0
    %v664 = vmax.f32 %v336, 0.0
    %v665 = vmax.f32 %v527, 0.0
    %v666 = vmax.f32 %v529, 0.0
    %v667 = vmax.f32 %v338, 0.0
    %v668 = vmax.f32 %v340, 0.0
    %v669 = vmax.f32 %v531, 0.0
    %v670 = vmax.f32 %v533, 0.0
    %v671 = vmax.f32 %v344, 0.0
    %v672 = vmax.f32 %v346, 0.0
    %v673 = vmax.f32 %v537, 0.0
    %v674 = vmax.f32 %v539, 0.0
    %v675 = vmax.f32 %v348, 0.0
    %v676 = vmax.f32 %v350, 0.0
    %v677 = vmax.f32 %v541, 0.0
    %v678 = vmax.f32 %v543, 0.0
    %v679 = vmax.f32 %v354, 0.0
    %v680 = vmax.f32 %v356, 0.0
    %v681 = vmax.f32 %v547, 0.0
    %v682 = vmax.f32 %v549, 0.0
    %v683 = vmax.f32 %v358, 0.0
    %v684 = vmax.f32 %v360, 0.0
    %v685 = vmax.f32 %v551, 0.0
    %v686 = vmax.f32 %v553, 0.0
    %v687 = vmax.f32 %v364, 0.0
    %v688 = vmax.f32 %v366, 0.0
    %v689 = vmax.f32 %v557, 0.0
    %v690 = vmax.f32 %v559, 0.0
    %v691 = vmax.f32 %v368, 0.0
    %v692 = vmax.f32 %v370, 0.0
    %v693 = vmax.f32 %v561, 0.0
    %v694 = vmax.f32 %v563, 0.0
    %v695 = vmax.f32 %v374, 0.0
    %v696 = vmax.f32 %v376, 0.0
    %v697 = vmax.f32 %v567, 0.0
    %v698 = vmax.f32 %v569, 0.0
    %v699 = vmax.f32 %v378, 0.0
    %v700 = vmax.f32 %v380, 0.0
    %v701 = vmax.f32 %v571, 0.0
    %v702 = vmax.f32 %v573, 0.0
    %v703 = vpack.c.bf16 %v579, %v575
    %v704 = vpack.c.bf16 %v580, %v576
    %v705 = vpack.c.bf16 %v581, %v577
    %v706 = vpack.c.bf16 %v582, %v578
    %v707 = vpack.c.bf16 %v587, %v583
    %v708 = vpack.c.bf16 %v588, %v584
    %v709 = vpack.c.bf16 %v589, %v585
    %v710 = vpack.c.bf16 %v590, %v586
    %v711 = vpack.c.bf16 %v595, %v591
    %v712 = vpack.c.bf16 %v596, %v592
    %v713 = vpack.c.bf16 %v597, %v593
    %v714 = vpack.c.bf16 %v598, %v594
    %v715 = vpack.c.bf16 %v603, %v599
    %v716 = vpack.c.bf16 %v604, %v600
    %v717 = vpack.c.bf16 %v605, %v601
    %v718 = vpack.c.bf16 %v606, %v602
    %v719 = vpack.c.bf16 %v611, %v607
    %v720 = vpack.c.bf16 %v612, %v608
    %v721 = vpack.c.bf16 %v613, %v609
    %v722 = vpack.c.bf16 %v614, %v610
    %v723 = vpack.c.bf16 %v619, %v615
    %v724 = vpack.c.bf16 %v620, %v616
    %v725 = vpack.c.bf16 %v621, %v617
    %v726 = vpack.c.bf16 %v622, %v618
    %v727 = vpack.c.bf16 %v627, %v623
    %v728 = vpack.c.bf16 %v628, %v624
    %v729 = vpack.c.bf16 %v629, %v625
    %v730 = vpack.c.bf16 %v630, %v626
    %v731 = vpack.c.bf16 %v635, %v631
    %v732 = vpack.c.bf16 %v636, %v632
    %v733 = vpack.c.bf16 %v637, %v633
    %v734 = vpack.c.bf16 %v638, %v634
    %v735 = vpack.c.bf16 %v643, %v639
    %v736 = vpack.c.bf16 %v644, %v640
    %v737 = vpack.c.bf16 %v645, %v641
    %v738 = vpack.c.bf16 %v646, %v642
    %v739 = vpack.c.bf16 %v651, %v647
    %v740 = vpack.c.bf16 %v652, %v648
    %v741 = vpack.c.bf16 %v653, %v649
    %v742 = vpack.c.bf16 %v654, %v650
    %v743 = vpack.c.bf16 %v659, %v655
    %v744 = vpack.c.bf16 %v660, %v656
    %v745 = vpack.c.bf16 %v661, %v657
    %v746 = vpack.c.bf16 %v662, %v658
    %v747 = vpack.c.bf16 %v667, %v663
    %v748 = vpack.c.bf16 %v668, %v664
    %v749 = vpack.c.bf16 %v669, %v665
    %v750 = vpack.c.bf16 %v670, %v666
    %v751 = vpack.c.bf16 %v675, %v671
    %v752 = vpack.c.bf16 %v676, %v672
    %v753 = vpack.c.bf16 %v677, %v673
    %v754 = vpack.c.bf16 %v678, %v674
    %v755 = vpack.c.bf16 %v683, %v679
    %v756 = vpack.c.bf16 %v684, %v680
    %v757 = vpack.c.bf16 %v685, %v681
    %v758 = vpack.c.bf16 %v686, %v682
    %v759 = vpack.c.bf16 %v691, %v687
    %v760 = vpack.c.bf16 %v692, %v688
    %v761 = vpack.c.bf16 %v693, %v689
    %v762 = vpack.c.bf16 %v694, %v690
    %v763 = vpack.c.bf16 %v699, %v695
    %v764 = vpack.c.bf16 %v700, %v696
    %v765 = vpack.c.bf16 %v701, %v697
    %v766 = vpack.c.bf16 %v702, %v698
    %v767 = vld [vmem:[%s3] sm:$0xf]
    %v768 = vld [vmem:[%s3 + $0x4] sm:$0xf]
    %v769 = vld [vmem:[%s3 + $0x8] sm:$0xf]
    %v770 = vld [vmem:[%s3 + $0xc] sm:$0xf]
    %v771 = vld [vmem:[%s3 + $0x10] sm:$0xf]
    %v772 = vld [vmem:[%s3 + $0x14] sm:$0xf]
    %v773 = vld [vmem:[%s3 + $0x18] sm:$0xf]
    %v774 = vld [vmem:[%s3 + $0x1c] sm:$0xf]
    %v775 = vld [vmem:[%s3 + $0x20] sm:$0xf]
    %v776 = vld [vmem:[%s3 + $0x24] sm:$0xf]
    %v777 = vld [vmem:[%s3 + $0x28] sm:$0xf]
    %v778 = vld [vmem:[%s3 + $0x2c] sm:$0xf]
    %v779 = vld [vmem:[%s3 + $0x30] sm:$0xf]
    %v780 = vld [vmem:[%s3 + $0x34] sm:$0xf]
    %v781 = vld [vmem:[%s3 + $0x38] sm:$0xf]
    %v782 = vld [vmem:[%s3 + $0x3c] sm:$0xf]
    %v783 = vld [vmem:[%s3 + $0x40] sm:$0xf]
    %v784 = vld [vmem:[%s3 + $0x44] sm:$0xf]
    %v785 = vld [vmem:[%s3 + $0x48] sm:$0xf]
    %v786 = vld [vmem:[%s3 + $0x4c] sm:$0xf]
    %v787 = vld [vmem:[%s3 + $0x50] sm:$0xf]
    %v788 = vld [vmem:[%s3 + $0x54] sm:$0xf]
    %v789 = vld [vmem:[%s3 + $0x58] sm:$0xf]
    %v790 = vld [vmem:[%s3 + $0x5c] sm:$0xf]
    %v791 = vld [vmem:[%s3 + $0x60] sm:$0xf]
    %v792 = vld [vmem:[%s3 + $0x64] sm:$0xf]
    %v793 = vld [vmem:[%s3 + $0x68] sm:$0xf]
    %v794 = vld [vmem:[%s3 + $0x6c] sm:$0xf]
    %v795 = vld [vmem:[%s3 + $0x70] sm:$0xf]
    %v796 = vld [vmem:[%s3 + $0x74] sm:$0xf]
    %v797 = vld [vmem:[%s3 + $0x78] sm:$0xf]
    %v798 = vld [vmem:[%s3 + $0x7c] sm:$0xf]
    %v799 = vld [vmem:[%s3 + $0x80] sm:$0xf]
    %v800 = vld [vmem:[%s3 + $0x84] sm:$0xf]
    %v801 = vld [vmem:[%s3 + $0x88] sm:$0xf]
    %v802 = vld [vmem:[%s3 + $0x8c] sm:$0xf]
    %v803 = vld [vmem:[%s3 + $0x90] sm:$0xf]
    %v804 = vld [vmem:[%s3 + $0x94] sm:$0xf]
    %v805 = vld [vmem:[%s3 + $0x98] sm:$0xf]
    %v806 = vld [vmem:[%s3 + $0x9c] sm:$0xf]
    %v807 = vld [vmem:[%s3 + $0xa0] sm:$0xf]
    %v808 = vld [vmem:[%s3 + $0xa4] sm:$0xf]
    %v809 = vld [vmem:[%s3 + $0xa8] sm:$0xf]
    %v810 = vld [vmem:[%s3 + $0xac] sm:$0xf]
    %v811 = vld [vmem:[%s3 + $0xb0] sm:$0xf]
    %v812 = vld [vmem:[%s3 + $0xb4] sm:$0xf]
    %v813 = vld [vmem:[%s3 + $0xb8] sm:$0xf]
    %v814 = vld [vmem:[%s3 + $0xbc] sm:$0xf]
    %v815 = vld [vmem:[%s3 + $0xc0] sm:$0xf]
    %v816 = vld [vmem:[%s3 + $0xc4] sm:$0xf]
    %v817 = vld [vmem:[%s3 + $0xc8] sm:$0xf]
    %v818 = vld [vmem:[%s3 + $0xcc] sm:$0xf]
    %v819 = vld [vmem:[%s3 + $0xd0] sm:$0xf]
    %v820 = vld [vmem:[%s3 + $0xd4] sm:$0xf]
    %v821 = vld [vmem:[%s3 + $0xd8] sm:$0xf]
    %v822 = vld [vmem:[%s3 + $0xdc] sm:$0xf]
    %v823 = vld [vmem:[%s3 + $0xe0] sm:$0xf]
    %v824 = vld [vmem:[%s3 + $0xe4] sm:$0xf]
    %v825 = vld [vmem:[%s3 + $0xe8] sm:$0xf]
    %v826 = vld [vmem:[%s3 + $0xec] sm:$0xf]
    %v827 = vld [vmem:[%s3 + $0xf0] sm:$0xf]
    %v828 = vld [vmem:[%s3 + $0xf4] sm:$0xf]
    %v829 = vld [vmem:[%s3 + $0xf8] sm:$0xf]
    %v830 = vld [vmem:[%s3 + $0xfc] sm:$0xf]
    %v831 = vld [vmem:[%s4] sm:$0x1]
    %v833 = vlaneseq
    %v834 = vshrl.u32 %v833, 7
    %v835 = vsub.s32 0, %v834
    %v836 = vrot.slane %v831, %v835
    %v902 = vunpack.c.l.b16 %v767
    %v903 = vunpack.c.l.b16 %v768
    %v904 = vunpack.c.l.b16 %v769
    %v905 = vunpack.c.l.b16 %v770
    %v906 = vunpack.c.l.b16 %v771
    %v907 = vunpack.c.l.b16 %v772
    %v908 = vunpack.c.l.b16 %v773
    %v909 = vunpack.c.l.b16 %v774
    %v910 = vunpack.c.l.b16 %v775
    %v911 = vunpack.c.l.b16 %v776
    %v912 = vunpack.c.l.b16 %v777
    %v913 = vunpack.c.l.b16 %v778
    %v914 = vunpack.c.l.b16 %v779
    %v915 = vunpack.c.l.b16 %v780
    %v916 = vunpack.c.l.b16 %v781
    %v917 = vunpack.c.l.b16 %v782
    %v918 = vunpack.c.l.b16 %v783
    %v919 = vunpack.c.l.b16 %v784
    %v920 = vunpack.c.l.b16 %v785
    %v921 = vunpack.c.l.b16 %v786
    %v922 = vunpack.c.l.b16 %v787
    %v923 = vunpack.c.l.b16 %v788
    %v924 = vunpack.c.l.b16 %v789
    %v925 = vunpack.c.l.b16 %v790
    %v926 = vunpack.c.l.b16 %v791
    %v927 = vunpack.c.l.b16 %v792
    %v928 = vunpack.c.l.b16 %v793
    %v929 = vunpack.c.l.b16 %v794
    %v930 = vunpack.c.l.b16 %v795
    %v931 = vunpack.c.l.b16 %v796
    %v932 = vunpack.c.l.b16 %v797
    %v933 = vunpack.c.l.b16 %v798
    %v934 = vunpack.c.l.b16 %v799
    %v935 = vunpack.c.l.b16 %v800
    %v936 = vunpack.c.l.b16 %v801
    %v937 = vunpack.c.l.b16 %v802
    %v938 = vunpack.c.l.b16 %v803
    %v939 = vunpack.c.l.b16 %v804
    %v940 = vunpack.c.l.b16 %v805
    %v941 = vunpack.c.l.b16 %v806
    %v942 = vunpack.c.l.b16 %v807
    %v943 = vunpack.c.l.b16 %v808
    %v944 = vunpack.c.l.b16 %v809
    %v945 = vunpack.c.l.b16 %v810
    %v946 = vunpack.c.l.b16 %v811
    %v947 = vunpack.c.l.b16 %v812
    %v948 = vunpack.c.l.b16 %v813
    %v949 = vunpack.c.l.b16 %v814
    %v950 = vunpack.c.l.b16 %v815
    %v951 = vunpack.c.l.b16 %v816
    %v952 = vunpack.c.l.b16 %v817
    %v953 = vunpack.c.l.b16 %v818
    %v954 = vunpack.c.l.b16 %v819
    %v955 = vunpack.c.l.b16 %v820
    %v956 = vunpack.c.l.b16 %v821
    %v957 = vunpack.c.l.b16 %v822
    %v958 = vunpack.c.l.b16 %v823
    %v959 = vunpack.c.l.b16 %v824
    %v960 = vunpack.c.l.b16 %v825
    %v961 = vunpack.c.l.b16 %v826
    %v962 = vunpack.c.l.b16 %v827
    %v963 = vunpack.c.l.b16 %v828
    %v964 = vunpack.c.l.b16 %v829
    %v965 = vunpack.c.l.b16 %v830
    %v966 = vpack.c.b16 %v903, %v902
    %v967 = vpack.c.b16 %v905, %v904
    %v968 = vpack.c.b16 %v907, %v906
    %v969 = vpack.c.b16 %v909, %v908
    %v970 = vpack.c.b16 %v911, %v910
    %v971 = vpack.c.b16 %v913, %v912
    %v972 = vpack.c.b16 %v915, %v914
    %v973 = vpack.c.b16 %v917, %v916
    %v974 = vpack.c.b16 %v919, %v918
    %v975 = vpack.c.b16 %v921, %v920
    %v976 = vpack.c.b16 %v923, %v922
    %v977 = vpack.c.b16 %v925, %v924
    %v978 = vpack.c.b16 %v927, %v926
    %v979 = vpack.c.b16 %v929, %v928
    %v980 = vpack.c.b16 %v931, %v930
    %v981 = vpack.c.b16 %v933, %v932
    %v982 = vpack.c.b16 %v935, %v934
    %v983 = vpack.c.b16 %v937, %v936
    %v984 = vpack.c.b16 %v939, %v938
    %v985 = vpack.c.b16 %v941, %v940
    %v986 = vpack.c.b16 %v943, %v942
    %v987 = vpack.c.b16 %v945, %v944
    %v988 = vpack.c.b16 %v947, %v946
    %v989 = vpack.c.b16 %v949, %v948
    %v990 = vpack.c.b16 %v951, %v950
    %v991 = vpack.c.b16 %v953, %v952
    %v992 = vpack.c.b16 %v955, %v954
    %v993 = vpack.c.b16 %v957, %v956
    %v994 = vpack.c.b16 %v959, %v958
    %v995 = vpack.c.b16 %v961, %v960
    %v996 = vpack.c.b16 %v963, %v962
    %v997 = vpack.c.b16 %v965, %v964
    %1030 = vmatprep.subr.bf16.mxu0 0
    %1031 = vmatpush1.bf16.msra.mxu0 %v966
    %1032 = vmatprep.subr.bf16.mxu0 0
    %1033 = vmatpush1.bf16.msra.mxu0 %v967
    %1034 = vmatprep.subr.bf16.mxu0 0
    %1035 = vmatpush1.bf16.msra.mxu0 %v968
    %1036 = vmatprep.subr.bf16.mxu0 0
    %1037 = vmatpush1.bf16.msra.mxu0 %v969
    %1038 = vmatprep.subr.bf16.mxu0 0
    %1039 = vmatpush1.bf16.msra.mxu0 %v970
    %1040 = vmatprep.subr.bf16.mxu0 0
    %1041 = vmatpush1.bf16.msra.mxu0 %v971
    %1042 = vmatprep.subr.bf16.mxu0 0
    %1043 = vmatpush1.bf16.msra.mxu0 %v972
    %1044 = vmatprep.subr.bf16.mxu0 0
    %1045 = vmatpush1.bf16.msra.mxu0 %v973
    %1046 = vmatprep.subr.bf16.mxu0 0
    %1047 = vmatpush1.bf16.msra.mxu0 %v974
    %1048 = vmatprep.subr.bf16.mxu0 0
    %1049 = vmatpush1.bf16.msra.mxu0 %v975
    %1050 = vmatprep.subr.bf16.mxu0 0
    %1051 = vmatpush1.bf16.msra.mxu0 %v976
    %1052 = vmatprep.subr.bf16.mxu0 0
    %1053 = vmatpush1.bf16.msra.mxu0 %v977
    %1054 = vmatprep.subr.bf16.mxu0 0
    %1055 = vmatpush1.bf16.msra.mxu0 %v978
    %1056 = vmatprep.subr.bf16.mxu0 0
    %1057 = vmatpush1.bf16.msra.mxu0 %v979
    %1058 = vmatprep.subr.bf16.mxu0 0
    %1059 = vmatpush1.bf16.msra.mxu0 %v980
    %1060 = vmatprep.subr.bf16.mxu0 0
    %1061 = vmatpush1.bf16.msra.mxu0 %v981
    %1062 = vmatprep.mubr.bf16.mxu0 %v704
    %1063 = vmatmul.mubr.bf16.gmra.mrb[0].mxu0 %v703
    %v1064 = vpop.f32.mrb[0].mxu0
    %v1065 = vadd.f32 %v836, %v1064
    %v1066 = vpop.f32.mrb[0].mxu0
    %v1067 = vpop.f32.mrb[0].mxu0
    %v1068 = vadd.f32 %v836, %v1067
    %v1069 = vpop.f32.mrb[0].mxu0
    %1070 = vmatprep.mubr.bf16.mxu0 %v708
    %1071 = vmatmul.mubr.bf16.gmra.mrb[0].mxu0 %v707
    %v1072 = vpop.f32.mrb[0].mxu0
    %v1073 = vadd.f32 %v836, %v1072
    %v1074 = vpop.f32.mrb[0].mxu0
    %v1075 = vpop.f32.mrb[0].mxu0
    %v1076 = vadd.f32 %v836, %v1075
    %v1077 = vpop.f32.mrb[0].mxu0
    %1078 = vmatprep.mubr.bf16.mxu0 %v712
    %1079 = vmatmul.mubr.bf16.gmra.mrb[0].mxu0 %v711
    %v1080 = vpop.f32.mrb[0].mxu0
    %v1081 = vadd.f32 %v836, %v1080
    %v1082 = vpop.f32.mrb[0].mxu0
    %v1083 = vpop.f32.mrb[0].mxu0
    %v1084 = vadd.f32 %v836, %v1083
    %v1085 = vpop.f32.mrb[0].mxu0
    %1086 = vmatprep.mubr.bf16.mxu0 %v716
    %1087 = vmatmul.mubr.bf16.gmra.mrb[0].mxu0 %v715
    %v1088 = vpop.f32.mrb[0].mxu0
    %v1089 = vadd.f32 %v836, %v1088
    %v1090 = vpop.f32.mrb[0].mxu0
    %v1091 = vpop.f32.mrb[0].mxu0
    %v1092 = vadd.f32 %v836, %v1091
    %v1093 = vpop.f32.mrb[0].mxu0
    %1094 = vmatprep.mubr.bf16.mxu0 %v720
    %1095 = vmatmul.mubr.bf16.gmra.mrb[0].mxu0 %v719
    %v1096 = vpop.f32.mrb[0].mxu0
    %v1097 = vadd.f32 %v836, %v1096
    %v1098 = vpop.f32.mrb[0].mxu0
    %v1099 = vpop.f32.mrb[0].mxu0
    %v1100 = vadd.f32 %v836, %v1099
    %v1101 = vpop.f32.mrb[0].mxu0
    %1102 = vmatprep.mubr.bf16.mxu0 %v724
    %1103 = vmatmul.mubr.bf16.gmra.mrb[0].mxu0 %v723
    %v1104 = vpop.f32.mrb[0].mxu0
    %v1105 = vadd.f32 %v836, %v1104
    %v1106 = vpop.f32.mrb[0].mxu0
    %v1107 = vpop.f32.mrb[0].mxu0
    %v1108 = vadd.f32 %v836, %v1107
    %v1109 = vpop.f32.mrb[0].mxu0
    %1110 = vmatprep.mubr.bf16.mxu0 %v728
    %1111 = vmatmul.mubr.bf16.gmra.mrb[0].mxu0 %v727
    %v1112 = vpop.f32.mrb[0].mxu0
    %v1113 = vadd.f32 %v836, %v1112
    %v1114 = vpop.f32.mrb[0].mxu0
    %v1115 = vpop.f32.mrb[0].mxu0
    %v1116 = vadd.f32 %v836, %v1115
    %v1117 = vpop.f32.mrb[0].mxu0
    %1118 = vmatprep.mubr.bf16.mxu0 %v732
    %1119 = vmatmul.mubr.bf16.gmra.mrb[0].mxu0 %v731
    %v1120 = vpop.f32.mrb[0].mxu0
    %v1121 = vadd.f32 %v836, %v1120
    %v1122 = vpop.f32.mrb[0].mxu0
    %v1123 = vpop.f32.mrb[0].mxu0
    %v1124 = vadd.f32 %v836, %v1123
    %v1125 = vpop.f32.mrb[0].mxu0
    %1126 = vmatprep.mubr.bf16.mxu0 %v736
    %1127 = vmatmul.mubr.bf16.gmra.mrb[0].mxu0 %v735
    %v1128 = vpop.f32.mrb[0].mxu0
    %v1129 = vadd.f32 %v836, %v1128
    %v1130 = vpop.f32.mrb[0].mxu0
    %v1131 = vpop.f32.mrb[0].mxu0
    %v1132 = vadd.f32 %v836, %v1131
    %v1133 = vpop.f32.mrb[0].mxu0
    %1134 = vmatprep.mubr.bf16.mxu0 %v740
    %1135 = vmatmul.mubr.bf16.gmra.mrb[0].mxu0 %v739
    %v1136 = vpop.f32.mrb[0].mxu0
    %v1137 = vadd.f32 %v836, %v1136
    %v1138 = vpop.f32.mrb[0].mxu0
    %v1139 = vpop.f32.mrb[0].mxu0
    %v1140 = vadd.f32 %v836, %v1139
    %v1141 = vpop.f32.mrb[0].mxu0
    %1142 = vmatprep.mubr.bf16.mxu0 %v744
    %1143 = vmatmul.mubr.bf16.gmra.mrb[0].mxu0 %v743
    %v1144 = vpop.f32.mrb[0].mxu0
    %v1145 = vadd.f32 %v836, %v1144
    %v1146 = vpop.f32.mrb[0].mxu0
    %v1147 = vpop.f32.mrb[0].mxu0
    %v1148 = vadd.f32 %v836, %v1147
    %v1149 = vpop.f32.mrb[0].mxu0
    %1150 = vmatprep.mubr.bf16.mxu0 %v748
    %1151 = vmatmul.mubr.bf16.gmra.mrb[0].mxu0 %v747
    %v1152 = vpop.f32.mrb[0].mxu0
    %v1153 = vadd.f32 %v836, %v1152
    %v1154 = vpop.f32.mrb[0].mxu0
    %v1155 = vpop.f32.mrb[0].mxu0
    %v1156 = vadd.f32 %v836, %v1155
    %v1157 = vpop.f32.mrb[0].mxu0
    %1158 = vmatprep.mubr.bf16.mxu0 %v752
    %1159 = vmatmul.mubr.bf16.gmra.mrb[0].mxu0 %v751
    %v1160 = vpop.f32.mrb[0].mxu0
    %v1161 = vadd.f32 %v836, %v1160
    %v1162 = vpop.f32.mrb[0].mxu0
    %v1163 = vpop.f32.mrb[0].mxu0
    %v1164 = vadd.f32 %v836, %v1163
    %v1165 = vpop.f32.mrb[0].mxu0
    %1166 = vmatprep.mubr.bf16.mxu0 %v756
    %1167 = vmatmul.mubr.bf16.gmra.mrb[0].mxu0 %v755
    %v1168 = vpop.f32.mrb[0].mxu0
    %v1169 = vadd.f32 %v836, %v1168
    %v1170 = vpop.f32.mrb[0].mxu0
    %v1171 = vpop.f32.mrb[0].mxu0
    %v1172 = vadd.f32 %v836, %v1171
    %v1173 = vpop.f32.mrb[0].mxu0
    %1174 = vmatprep.mubr.bf16.mxu0 %v760
    %1175 = vmatmul.mubr.bf16.gmra.mrb[0].mxu0 %v759
    %v1176 = vpop.f32.mrb[0].mxu0
    %v1177 = vadd.f32 %v836, %v1176
    %v1178 = vpop.f32.mrb[0].mxu0
    %v1179 = vpop.f32.mrb[0].mxu0
    %v1180 = vadd.f32 %v836, %v1179
    %v1181 = vpop.f32.mrb[0].mxu0
    %1182 = vmatprep.mubr.bf16.mxu0 %v764
    %1183 = vmatmul.mubr.bf16.gmra.mrb[0].mxu0 %v763
    %v1184 = vpop.f32.mrb[0].mxu0
    %v1185 = vadd.f32 %v836, %v1184
    %v1186 = vpop.f32.mrb[0].mxu0
    %v1187 = vpop.f32.mrb[0].mxu0
    %v1188 = vadd.f32 %v836, %v1187
    %v1189 = vpop.f32.mrb[0].mxu0
    %1190 = vdwg.mxu0
    %1191 = vmatprep.subr.bf16.mxu0 0
    %1192 = vmatpush1.bf16.msra.mxu0 %v982
    %1193 = vmatprep.subr.bf16.mxu0 0
    %1194 = vmatpush1.bf16.msra.mxu0 %v983
    %1195 = vmatprep.subr.bf16.mxu0 0
    %1196 = vmatpush1.bf16.msra.mxu0 %v984
    %1197 = vmatprep.subr.bf16.mxu0 0
    %1198 = vmatpush1.bf16.msra.mxu0 %v985
    %1199 = vmatprep.subr.bf16.mxu0 0
    %1200 = vmatpush1.bf16.msra.mxu0 %v986
    %1201 = vmatprep.subr.bf16.mxu0 0
    %1202 = vmatpush1.bf16.msra.mxu0 %v987
    %1203 = vmatprep.subr.bf16.mxu0 0
    %1204 = vmatpush1.bf16.msra.mxu0 %v988
    %1205 = vmatprep.subr.bf16.mxu0 0
    %1206 = vmatpush1.bf16.msra.mxu0 %v989
    %1207 = vmatprep.subr.bf16.mxu0 0
    %1208 = vmatpush1.bf16.msra.mxu0 %v990
    %1209 = vmatprep.subr.bf16.mxu0 0
    %1210 = vmatpush1.bf16.msra.mxu0 %v991
    %1211 = vmatprep.subr.bf16.mxu0 0
    %1212 = vmatpush1.bf16.msra.mxu0 %v992
    %1213 = vmatprep.subr.bf16.mxu0 0
    %1214 = vmatpush1.bf16.msra.mxu0 %v993
    %1215 = vmatprep.subr.bf16.mxu0 0
    %1216 = vmatpush1.bf16.msra.mxu0 %v994
    %1217 = vmatprep.subr.bf16.mxu0 0
    %1218 = vmatpush1.bf16.msra.mxu0 %v995
    %1219 = vmatprep.subr.bf16.mxu0 0
    %1220 = vmatpush1.bf16.msra.mxu0 %v996
    %1221 = vmatprep.subr.bf16.mxu0 0
    %1222 = vmatpush1.bf16.msra.mxu0 %v997
    %1223 = vmatprep.mubr.bf16.mxu0 %v706
    %1224 = vmatmul.mubr.bf16.gmra.mrb[0].mxu0 %v705
    %v1225 = vpop.f32.mrb[0].mxu0
    %v1226 = vadd.f32 %v1065, %v1225
    %v1227 = vpop.f32.mrb[0].mxu0
    %v1228 = vpop.f32.mrb[0].mxu0
    %v1229 = vadd.f32 %v1068, %v1228
    %v1230 = vpop.f32.mrb[0].mxu0
    %1231 = vmatprep.mubr.bf16.mxu0 %v710
    %1232 = vmatmul.mubr.bf16.gmra.mrb[0].mxu0 %v709
    %v1233 = vpop.f32.mrb[0].mxu0
    %v1234 = vadd.f32 %v1073, %v1233
    %v1235 = vpop.f32.mrb[0].mxu0
    %v1236 = vpop.f32.mrb[0].mxu0
    %v1237 = vadd.f32 %v1076, %v1236
    %v1238 = vpop.f32.mrb[0].mxu0
    %1239 = vmatprep.mubr.bf16.mxu0 %v714
    %1240 = vmatmul.mubr.bf16.gmra.mrb[0].mxu0 %v713
    %v1241 = vpop.f32.mrb[0].mxu0
    %v1242 = vadd.f32 %v1081, %v1241
    %v1243 = vpop.f32.mrb[0].mxu0
    %v1244 = vpop.f32.mrb[0].mxu0
    %v1245 = vadd.f32 %v1084, %v1244
    %v1246 = vpop.f32.mrb[0].mxu0
    %1247 = vmatprep.mubr.bf16.mxu0 %v718
    %1248 = vmatmul.mubr.bf16.gmra.mrb[0].mxu0 %v717
    %v1249 = vpop.f32.mrb[0].mxu0
    %v1250 = vadd.f32 %v1089, %v1249
    %v1251 = vpop.f32.mrb[0].mxu0
    %v1252 = vpop.f32.mrb[0].mxu0
    %v1253 = vadd.f32 %v1092, %v1252
    %v1254 = vpop.f32.mrb[0].mxu0
    %1255 = vmatprep.mubr.bf16.mxu0 %v722
    %1256 = vmatmul.mubr.bf16.gmra.mrb[0].mxu0 %v721
    %v1257 = vpop.f32.mrb[0].mxu0
    %v1258 = vadd.f32 %v1097, %v1257
    %v1259 = vpop.f32.mrb[0].mxu0
    %v1260 = vpop.f32.mrb[0].mxu0
    %v1261 = vadd.f32 %v1100, %v1260
    %v1262 = vpop.f32.mrb[0].mxu0
    %1263 = vmatprep.mubr.bf16.mxu0 %v726
    %1264 = vmatmul.mubr.bf16.gmra.mrb[0].mxu0 %v725
    %v1265 = vpop.f32.mrb[0].mxu0
    %v1266 = vadd.f32 %v1105, %v1265
    %v1267 = vpop.f32.mrb[0].mxu0
    %v1268 = vpop.f32.mrb[0].mxu0
    %v1269 = vadd.f32 %v1108, %v1268
    %v1270 = vpop.f32.mrb[0].mxu0
    %1271 = vmatprep.mubr.bf16.mxu0 %v730
    %1272 = vmatmul.mubr.bf16.gmra.mrb[0].mxu0 %v729
    %v1273 = vpop.f32.mrb[0].mxu0
    %v1274 = vadd.f32 %v1113, %v1273
    %v1275 = vpop.f32.mrb[0].mxu0
    %v1276 = vpop.f32.mrb[0].mxu0
    %v1277 = vadd.f32 %v1116, %v1276
    %v1278 = vpop.f32.mrb[0].mxu0
    %1279 = vmatprep.mubr.bf16.mxu0 %v734
    %1280 = vmatmul.mubr.bf16.gmra.mrb[0].mxu0 %v733
    %v1281 = vpop.f32.mrb[0].mxu0
    %v1282 = vadd.f32 %v1121, %v1281
    %v1283 = vpop.f32.mrb[0].mxu0
    %v1284 = vpop.f32.mrb[0].mxu0
    %v1285 = vadd.f32 %v1124, %v1284
    %v1286 = vpop.f32.mrb[0].mxu0
    %1287 = vmatprep.mubr.bf16.mxu0 %v738
    %1288 = vmatmul.mubr.bf16.gmra.mrb[0].mxu0 %v737
    %v1289 = vpop.f32.mrb[0].mxu0
    %v1290 = vadd.f32 %v1129, %v1289
    %v1291 = vpop.f32.mrb[0].mxu0
    %v1292 = vpop.f32.mrb[0].mxu0
    %v1293 = vadd.f32 %v1132, %v1292
    %v1294 = vpop.f32.mrb[0].mxu0
    %1295 = vmatprep.mubr.bf16.mxu0 %v742
    %1296 = vmatmul.mubr.bf16.gmra.mrb[0].mxu0 %v741
    %v1297 = vpop.f32.mrb[0].mxu0
    %v1298 = vadd.f32 %v1137, %v1297
    %v1299 = vpop.f32.mrb[0].mxu0
    %v1300 = vpop.f32.mrb[0].mxu0
    %v1301 = vadd.f32 %v1140, %v1300
    %v1302 = vpop.f32.mrb[0].mxu0
    %1303 = vmatprep.mubr.bf16.mxu0 %v746
    %1304 = vmatmul.mubr.bf16.gmra.mrb[0].mxu0 %v745
    %v1305 = vpop.f32.mrb[0].mxu0
    %v1306 = vadd.f32 %v1145, %v1305
    %v1307 = vpop.f32.mrb[0].mxu0
    %v1308 = vpop.f32.mrb[0].mxu0
    %v1309 = vadd.f32 %v1148, %v1308
    %v1310 = vpop.f32.mrb[0].mxu0
    %1311 = vmatprep.mubr.bf16.mxu0 %v750
    %1312 = vmatmul.mubr.bf16.gmra.mrb[0].mxu0 %v749
    %v1313 = vpop.f32.mrb[0].mxu0
    %v1314 = vadd.f32 %v1153, %v1313
    %v1315 = vpop.f32.mrb[0].mxu0
    %v1316 = vpop.f32.mrb[0].mxu0
    %v1317 = vadd.f32 %v1156, %v1316
    %v1318 = vpop.f32.mrb[0].mxu0
    %1319 = vmatprep.mubr.bf16.mxu0 %v754
    %1320 = vmatmul.mubr.bf16.gmra.mrb[0].mxu0 %v753
    %v1321 = vpop.f32.mrb[0].mxu0
    %v1322 = vadd.f32 %v1161, %v1321
    %v1323 = vpop.f32.mrb[0].mxu0
    %v1324 = vpop.f32.mrb[0].mxu0
    %v1325 = vadd.f32 %v1164, %v1324
    %v1326 = vpop.f32.mrb[0].mxu0
    %1327 = vmatprep.mubr.bf16.mxu0 %v758
    %1328 = vmatmul.mubr.bf16.gmra.mrb[0].mxu0 %v757
    %v1329 = vpop.f32.mrb[0].mxu0
    %v1330 = vadd.f32 %v1169, %v1329
    %v1331 = vpop.f32.mrb[0].mxu0
    %v1332 = vpop.f32.mrb[0].mxu0
    %v1333 = vadd.f32 %v1172, %v1332
    %v1334 = vpop.f32.mrb[0].mxu0
    %1335 = vmatprep.mubr.bf16.mxu0 %v762
    %1336 = vmatmul.mubr.bf16.gmra.mrb[0].mxu0 %v761
    %v1337 = vpop.f32.mrb[0].mxu0
    %v1338 = vadd.f32 %v1177, %v1337
    %v1339 = vpop.f32.mrb[0].mxu0
    %v1340 = vpop.f32.mrb[0].mxu0
    %v1341 = vadd.f32 %v1180, %v1340
    %v1342 = vpop.f32.mrb[0].mxu0
    %1343 = vmatprep.mubr.bf16.mxu0 %v766
    %1344 = vmatmul.mubr.bf16.gmra.mrb[0].mxu0 %v765
    %v1345 = vpop.f32.mrb[0].mxu0
    %v1346 = vadd.f32 %v1185, %v1345
    %v1347 = vpop.f32.mrb[0].mxu0
    %v1348 = vpop.f32.mrb[0].mxu0
    %v1349 = vadd.f32 %v1188, %v1348
    %v1350 = vpop.f32.mrb[0].mxu0
    %1351 = vdwg.mxu0
    %v1352 = vmax.f32 %v1226, 0.0
    %v1353 = vmax.f32 %v1229, 0.0
    %v1354 = vmax.f32 %v1234, 0.0
    %v1355 = vmax.f32 %v1237, 0.0
    %v1356 = vmax.f32 %v1242, 0.0
    %v1357 = vmax.f32 %v1245, 0.0
    %v1358 = vmax.f32 %v1250, 0.0
    %v1359 = vmax.f32 %v1253, 0.0
    %v1360 = vmax.f32 %v1258, 0.0
    %v1361 = vmax.f32 %v1261, 0.0
    %v1362 = vmax.f32 %v1266, 0.0
    %v1363 = vmax.f32 %v1269, 0.0
    %v1364 = vmax.f32 %v1274, 0.0
    %v1365 = vmax.f32 %v1277, 0.0
    %v1366 = vmax.f32 %v1282, 0.0
    %v1367 = vmax.f32 %v1285, 0.0
    %v1368 = vmax.f32 %v1290, 0.0
    %v1369 = vmax.f32 %v1293, 0.0
    %v1370 = vmax.f32 %v1298, 0.0
    %v1371 = vmax.f32 %v1301, 0.0
    %v1372 = vmax.f32 %v1306, 0.0
    %v1373 = vmax.f32 %v1309, 0.0
    %v1374 = vmax.f32 %v1314, 0.0
    %v1375 = vmax.f32 %v1317, 0.0
    %v1376 = vmax.f32 %v1322, 0.0
    %v1377 = vmax.f32 %v1325, 0.0
    %v1378 = vmax.f32 %v1330, 0.0
    %v1379 = vmax.f32 %v1333, 0.0
    %v1380 = vmax.f32 %v1338, 0.0
    %v1381 = vmax.f32 %v1341, 0.0
    %v1382 = vmax.f32 %v1346, 0.0
    %v1383 = vmax.f32 %v1349, 0.0
    %1384 = vst [vmem:[#allocation2] sm:$0xff] %v1352
    %1385 = vst [vmem:[#allocation2 + $0x8] sm:$0xff] %v1353
    %1386 = vst [vmem:[#allocation2 + $0x10] sm:$0xff] %v1354
    %1387 = vst [vmem:[#allocation2 + $0x18] sm:$0xff] %v1355
    %1388 = vst [vmem:[#allocation2 + $0x20] sm:$0xff] %v1356
    %1389 = vst [vmem:[#allocation2 + $0x28] sm:$0xff] %v1357
    %1390 = vst [vmem:[#allocation2 + $0x30] sm:$0xff] %v1358
    %1391 = vst [vmem:[#allocation2 + $0x38] sm:$0xff] %v1359
    %1392 = vst [vmem:[#allocation2 + $0x40] sm:$0xff] %v1360
    %1393 = vst [vmem:[#allocation2 + $0x48] sm:$0xff] %v1361
    %1394 = vst [vmem:[#allocation2 + $0x50] sm:$0xff] %v1362
    %1395 = vst [vmem:[#allocation2 + $0x58] sm:$0xff] %v1363
    %1396 = vst [vmem:[#allocation2 + $0x60] sm:$0xff] %v1364
    %1397 = vst [vmem:[#allocation2 + $0x68] sm:$0xff] %v1365
    %1398 = vst [vmem:[#allocation2 + $0x70] sm:$0xff] %v1366
    %1399 = vst [vmem:[#allocation2 + $0x78] sm:$0xff] %v1367
    %1400 = vst [vmem:[#allocation2 + $0x80] sm:$0xff] %v1368
    %1401 = vst [vmem:[#allocation2 + $0x88] sm:$0xff] %v1369
    %1402 = vst [vmem:[#allocation2 + $0x90] sm:$0xff] %v1370
    %1403 = vst [vmem:[#allocation2 + $0x98] sm:$0xff] %v1371
    %1404 = vst [vmem:[#allocation2 + $0xa0] sm:$0xff] %v1372
    %1405 = vst [vmem:[#allocation2 + $0xa8] sm:$0xff] %v1373
    %1406 = vst [vmem:[#allocation2 + $0xb0] sm:$0xff] %v1374
    %1407 = vst [vmem:[#allocation2 + $0xb8] sm:$0xff] %v1375
    %1408 = vst [vmem:[#allocation2 + $0xc0] sm:$0xff] %v1376
    %1409 = vst [vmem:[#allocation2 + $0xc8] sm:$0xff] %v1377
    %1410 = vst [vmem:[#allocation2 + $0xd0] sm:$0xff] %v1378
    %1411 = vst [vmem:[#allocation2 + $0xd8] sm:$0xff] %v1379
    %1412 = vst [vmem:[#allocation2 + $0xe0] sm:$0xff] %v1380
    %1413 = vst [vmem:[#allocation2 + $0xe8] sm:$0xff] %v1381
    %1414 = vst [vmem:[#allocation2 + $0xf0] sm:$0xff] %v1382
    %1415 = vst [vmem:[#allocation2 + $0xf8] sm:$0xff] %v1383
    // Predicated region
    $region22: #{tpu_custom_call.1} parent=1 // pred_check
      _
    $region23: #{tpu_custom_call.1} parent=1 // pred_check_branch
      %1417 = sbr.rel (0) target = $region25
    $region24: #{tpu_custom_call.1} parent=1 // pred_region
      %s1419 = ssub.s32 4096, 4096
      %1420 = vsyncadd [#allocation3], %s1419
      %s1421 = sshll.u32 [#allocation2], 4
      %s1422 = int_to_ptr.vmem [resolvable:$true] %s1421
      %1427 = dma.vmem_to_hbm [thread:$0]  %s1422, 4096, %s5, [#allocation3], 128, 128, 8
    $region25: #{tpu_custom_call.1} parent=1 // pred_fallthru
      _
    // Predicated region
    $region26: #{tpu_custom_call.1} parent=1 // pred_check
      _
    $region27: #{tpu_custom_call.1} parent=1 // pred_check_branch
      %1429 = sbr.rel (0) target = $region29
    $region28: #{tpu_custom_call.1} parent=1 // pred_region
      %1430 = dma.done [#allocation3], 4096
    $region29: #{tpu_custom_call.1} parent=1 // pred_fallthru
      _
    %1431 = vsyncpa [#allocation3], 1

</llo_original>
